<compile_context>
chip_gen: v7x
topology: tpu7x:2x2x1
jax: 0.10.0
libtpu: 0.0.40
codegen_flags: <defaults>
</compile_context>

<pallas_src>
import functools

import numpy as np
import jax
import jax.numpy as jnp
from jax.experimental import pallas as pl
from jax.experimental.pallas import tpu as pltpu


def _round_up(x, m):
    return ((x + m - 1) // m) * m


def _scatter_kernel(blk_ref, cnt_ref, hi_ref,          # scalar prefetch (SMEM)
                    klo_ref, khi_ref, flo_ref, fhi_ref,  # VMEM inputs
                    out_ref,                             # VMEM output block
                    *, tile_s, n_s):
    """One (batch, spatial-tile) step of the scatter.

    klo/khi : (tile_s, 1) int32   sorted packed keys, lo / hi window
    flo/fhi : (C, tile_s)         pre-transposed pillar features, lo / hi window
    out_ref : (1, C, tile_s)      dense BEV canvas block for this tile
    """
    b = pl.program_id(0)
    s = pl.program_id(1)
    t = b * n_s + s
    count = cnt_ref[t]

    # Packed key of every output column (lane) covered by this tile.
    base = t * tile_s
    pos = jax.lax.broadcasted_iota(jnp.int32, (1, tile_s), 1) + base

    @pl.when(count == 0)
    def _():
        # Empty-tile fast path: most BEV tiles have no pillars.
        out_ref[...] = jnp.zeros_like(out_ref)

    @pl.when(count > 0)
    def _():
        # Pillar q hits column l iff key[q] == pos[l]; keys of neighbouring
        # tiles / padding never match, so a plain sum-scatter is exact.
        onehot = (klo_ref[...] == pos).astype(flo_ref.dtype)     # (tile_s, tile_s)
        acc = jax.lax.dot_general(
            flo_ref[...], onehot,
            dimension_numbers=(((1,), (0,)), ((), ())),
            preferred_element_type=jnp.float32)                  # (C, tile_s)
        out_ref[...] = acc[None].astype(out_ref.dtype)

    @pl.when(hi_ref[t] > 0)
    def _():
        # Only when this tile's sorted run crosses a tile_s block boundary.
        onehot = (khi_ref[...] == pos).astype(fhi_ref.dtype)
        acc = jax.lax.dot_general(
            fhi_ref[...], onehot,
            dimension_numbers=(((1,), (0,)), ((), ())),
            preferred_element_type=jnp.float32)
        # Lo / hi contributions never overlap on the same column (unique keys),
        # so the += is exact.
        out_ref[...] = out_ref[...] + acc[None].astype(out_ref.dtype)


def pointpillar_scatter_lane(pillar_features, coords, *, num_bev_features,
                             grid_size, batch_size=None, tile_s=None,
                             debug_check_unique=False):
    """JAX/Pallas equivalent of PointPillarScatter_lane.forward (default cfg).

    pillar_features: (P, C) float32 / bfloat16
    coords:          (P, 4) int32, columns = (batch_idx, z, y, x)
    grid_size:       (nx, ny, nz) with nz == 1
    batch_size:      pass statically from config to avoid a host sync; if None,
                     derived as max(coords[:,0]) + 1 like the PyTorch module.
    returns:         (batch_size, C * nz, ny, nx)  (NCHW)
    """
    nx, ny, nz = grid_size
    assert nz == 1, "default (non WITH_MAX_VOXEL) path requires nz == 1"
    P, C = pillar_features.shape
    assert C == num_bev_features

    if batch_size is None:
        # Data-dependent fallback, matches the PyTorch module (host sync; prefer
        # passing batch_size statically from the dataloader config).
        batch_size = int(jnp.max(coords[:, 0])) + 1

    S = nz * nx * ny
    if tile_s is None:
        tile_s = 512
    tile_s = max(128, min(_round_up(tile_s, 128), _round_up(S, 128)))
    s_pad = _round_up(S, tile_s)
    n_s = s_pad // tile_s
    assert batch_size * s_pad < 2 ** 31, "packed int32 key would overflow"

    coords = coords.astype(jnp.int32)
    flat_idx = coords[:, 1] + coords[:, 2] * nx + coords[:, 3]    # z + y*nx + x
    key = coords[:, 0] * s_pad + flat_idx                         # (P,) int32

    if debug_check_unique:
        assert np.unique(np.asarray(key)).size == P, \
            "duplicate (batch, voxel) coords: scatter would sum, not overwrite"

    # Sort pillars by packed key so each output tile's pillars are contiguous.
    order = jnp.argsort(key)
    key_s = key[order]                                            # (P,) sorted
    feat_s = pillar_features[order]                               # (P, C)

    # Per-(batch, spatial-tile) start offsets / counts in the sorted list.
    bounds = jnp.arange(batch_size * n_s + 1, dtype=jnp.int32) * tile_s
    cuts = jnp.searchsorted(key_s, bounds, side="left").astype(jnp.int32)
    starts = cuts[:-1]                                            # (B*n_s,)
    counts = cuts[1:] - cuts[:-1]                                 # (B*n_s,)
    blk = starts // tile_s                                        # lo block index
    need_hi = ((starts % tile_s + counts) > tile_s).astype(jnp.int32)

    # Pad the sorted arrays so the lo/hi windows are always in bounds.  The
    # INT32_MAX sentinel keeps sortedness and can never match a valid position.
    p_blk = (P // tile_s + 2) * tile_s
    pad = p_blk - P
    key_s = jnp.pad(key_s, (0, pad), constant_values=jnp.iinfo(jnp.int32).max)
    feat_s = jnp.pad(feat_s, ((0, pad), (0, 0)))
    key2d = key_s.reshape(p_blk, 1)
    feat_t = feat_s.T                                             # (C, p_blk)

    grid_spec = pltpu.PrefetchScalarGridSpec(
        num_scalar_prefetch=3,
        grid=(batch_size, n_s),
        in_specs=[
            # sorted keys, lo / hi windows (data-dependent block index)
            pl.BlockSpec((tile_s, 1),
                         lambda b, s, blk_r, cnt_r, hi_r: (blk_r[b * n_s + s], 0)),
            pl.BlockSpec((tile_s, 1),
                         lambda b, s, blk_r, cnt_r, hi_r: (blk_r[b * n_s + s] + 1, 0)),
            # pre-transposed features, lo / hi windows
            pl.BlockSpec((C, tile_s),
                         lambda b, s, blk_r, cnt_r, hi_r: (0, blk_r[b * n_s + s])),
            pl.BlockSpec((C, tile_s),
                         lambda b, s, blk_r, cnt_r, hi_r: (0, blk_r[b * n_s + s] + 1)),
        ],
        out_specs=pl.BlockSpec((1, C, tile_s),
                               lambda b, s, blk_r, cnt_r, hi_r: (b, 0, s)),
    )

    out_flat = pl.pallas_call(
        functools.partial(_scatter_kernel, tile_s=tile_s, n_s=n_s),
        out_shape=jax.ShapeDtypeStruct((batch_size, C, s_pad),
                                       pillar_features.dtype),
        grid_spec=grid_spec,
        compiler_params=pltpu.CompilerParams(
            dimension_semantics=("parallel", "parallel")),
    )(blk, counts, need_hi, key2d, key2d, feat_t, feat_t)

    if s_pad != S:
        out_flat = out_flat[:, :, :S]
    # Same view as PyTorch: (batch, C*nz, ny, nx)
    return out_flat.reshape(batch_size, C * nz, ny, nx)


def _reference(pillar_features, coords, num_bev_features, grid_size):
    """NumPy transcription of the PyTorch forward (default cfg)."""
    nx, ny, nz = grid_size
    pf = np.asarray(pillar_features)
    co = np.asarray(coords)
    batch_size = int(co[:, 0].max()) + 1
    outs = []
    for b in range(batch_size):
        spatial = np.zeros((num_bev_features, nz * nx * ny), dtype=pf.dtype)
        m = co[:, 0] == b
        this = co[m]
        idx = this[:, 1] + this[:, 2] * nx + this[:, 3]
        spatial[:, idx] = pf[m].T
        outs.append(spatial)
    out = np.stack(outs, 0)
    return out.reshape(batch_size, num_bev_features * nz, ny, nx)


if __name__ == "__main__":
    key = jax.random.PRNGKey(0)

    # Small, module-consistent shapes.
    num_bev_features = 32          # C
    nx, ny, nz = 16, 16, 1         # grid_size -> S = 256
    batch_size = 2
    pillars_per_batch = 20
    P = batch_size * pillars_per_batch

    k_feat, k_pos0, k_pos1 = jax.random.split(key, 3)

    # Unique voxel positions per batch (as guaranteed by pcdet voxelization).
    coord_rows = []
    for b, k in zip(range(batch_size), (k_pos0, k_pos1)):
        flat = jax.random.permutation(k, nx * ny)[:pillars_per_batch]
        y = flat // nx
        x = flat % nx
        z = jnp.zeros_like(x)
        bcol = jnp.full_like(x, b)
        coord_rows.append(jnp.stack([bcol, z, y, x], axis=1))
    coords = jnp.concatenate(coord_rows, axis=0).astype(jnp.int32)   # (P, 4)

    pillar_features = jax.random.normal(
        k_feat, (P, num_bev_features), dtype=jnp.float32)

    out = pointpillar_scatter_lane(
        pillar_features, coords,
        num_bev_features=num_bev_features,
        grid_size=(nx, ny, nz),
        batch_size=batch_size,           # static: no host sync
        debug_check_unique=True)
    out = jax.block_until_ready(out)

    ref = _reference(pillar_features, coords, num_bev_features, (nx, ny, nz))

    assert out.shape == (batch_size, num_bev_features * nz, ny, nx), out.shape
    assert np.allclose(np.asarray(out), ref, atol=1e-5, rtol=1e-5), \
        "mismatch vs reference"

    print("KERNEL_OK")
</pallas_src>

<mosaic_0001>
module attributes {stable_mosaic.version = 11 : i64} {
  func.func @_scatter_kernel(%arg0: i32, %arg1: i32, %arg2: memref<2xi32, #tpu.memory_space<smem>>, %arg3: memref<2xi32, #tpu.memory_space<smem>>, %arg4: memref<2xi32, #tpu.memory_space<smem>>, %arg5: memref<256x1xi32, #tpu.memory_space<vmem>>, %arg6: memref<256x1xi32, #tpu.memory_space<vmem>>, %arg7: memref<32x256xf32, #tpu.memory_space<vmem>>, %arg8: memref<32x256xf32, #tpu.memory_space<vmem>>, %arg9: memref<1x32x256xf32, #tpu.memory_space<vmem>>) attributes {dimension_semantics = [#tpu.dimension_semantics<parallel>, #tpu.dimension_semantics<parallel>], iteration_bounds = array<i64: 2, 1>, scalar_prefetch = 3 : i64, scratch_operands = 0 : i64, tpu.core_type = #tpu.core_type<tc>, window_params = [{transform_indices = @transform_0, window_bounds = array<i64: 256, 1>}, {transform_indices = @transform_1, window_bounds = array<i64: 256, 1>}, {transform_indices = @transform_2, window_bounds = array<i64: 32, 256>}, {transform_indices = @transform_3, window_bounds = array<i64: 32, 256>}, {transform_indices = @transform_4, window_bounds = array<i64: 1, 32, 256>}]} {
    %c1_i32 = arith.constant 1 : i32
    %0 = arith.muli %arg0, %c1_i32 : i32
    %1 = arith.addi %0, %arg1 : i32
    %2 = arith.index_cast %1 : i32 to index
    %3 = memref.load %arg3[%2] : memref<2xi32, #tpu.memory_space<smem>>
    %c256_i32 = arith.constant 256 : i32
    %4 = arith.muli %1, %c256_i32 : i32
    %5 = tpu.iota {dimensions = array<i32: 1>} : vector<1x256xi32>
    %6 = vector.broadcast %4 : i32 to vector<1x256xi32>
    %7 = arith.addi %5, %6 : vector<1x256xi32>
    %c0_i32 = arith.constant 0 : i32
    %8 = arith.cmpi eq, %3, %c0_i32 : i32
    %9 = arith.extui %8 : i1 to i32
    %c0_i32_0 = arith.constant 0 : i32
    %10 = arith.cmpi ne, %9, %c0_i32_0 : i32
    scf.if %10 {
      %cst = arith.constant 0.000000e+00 : f32
      %19 = vector.broadcast %cst : f32 to vector<1x32x256xf32>
      %c0 = arith.constant 0 : index
      %c0_5 = arith.constant 0 : index
      %c0_6 = arith.constant 0 : index
      %20 = vector.load %arg9[%c0, %c0_5, %c0_6] : memref<1x32x256xf32, #tpu.memory_space<vmem>>, vector<1x32x256xf32>
      tpu.vector_store %arg9[%c0, %c0_5, %c0_6], %19 {strides = array<i32>} : memref<1x32x256xf32, #tpu.memory_space<vmem>>, vector<1x32x256xf32>,
    } else {
    }
    %c0_i32_1 = arith.constant 0 : i32
    %11 = arith.cmpi sgt, %3, %c0_i32_1 : i32
    %12 = arith.extui %11 : i1 to i32
    %c0_i32_2 = arith.constant 0 : i32
    %13 = arith.cmpi ne, %12, %c0_i32_2 : i32
    scf.if %13 {
      %c0 = arith.constant 0 : index
      %c0_5 = arith.constant 0 : index
      %19 = vector.load %arg5[%c0, %c0_5] : memref<256x1xi32, #tpu.memory_space<vmem>>, vector<256x1xi32>
      %20 = vector.broadcast %19 : vector<256x1xi32> to vector<256x256xi32>
      %21 = vector.broadcast %7 : vector<1x256xi32> to vector<256x256xi32>
      %22 = arith.cmpi eq, %20, %21 : vector<256x256xi32>
      %23 = arith.extui %22 : vector<256x256xi1> to vector<256x256xi32>
      %24 = arith.sitofp %23 : vector<256x256xi32> to vector<256x256xf32>
      %c0_6 = arith.constant 0 : index
      %c0_7 = arith.constant 0 : index
      %25 = vector.load %arg7[%c0_6, %c0_7] : memref<32x256xf32, #tpu.memory_space<vmem>>, vector<32x256xf32>
      %cst = arith.constant dense<0.000000e+00> : vector<32x256xf32>
      %26 = tpu.matmul %25, %24, %cst {dimension_numbers = #tpu.dot_dimension_numbers<[1], [0], [0], [1], [0, 0, 1, 1], [], []>} : vector<32x256xf32>, vector<256x256xf32>, vector<32x256xf32> -> vector<32x256xf32>
      %27 = vector.shape_cast %26 : vector<32x256xf32> to vector<1x32x256xf32>
      %c0_8 = arith.constant 0 : index
      %c0_9 = arith.constant 0 : index
      %c0_10 = arith.constant 0 : index
      %28 = vector.load %arg9[%c0_8, %c0_9, %c0_10] : memref<1x32x256xf32, #tpu.memory_space<vmem>>, vector<1x32x256xf32>
      tpu.vector_store %arg9[%c0_8, %c0_9, %c0_10], %27 {strides = array<i32>} : memref<1x32x256xf32, #tpu.memory_space<vmem>>, vector<1x32x256xf32>,
    } else {
    }
    %14 = arith.index_cast %1 : i32 to index
    %15 = memref.load %arg4[%14] : memref<2xi32, #tpu.memory_space<smem>>
    %c0_i32_3 = arith.constant 0 : i32
    %16 = arith.cmpi sgt, %15, %c0_i32_3 : i32
    %17 = arith.extui %16 : i1 to i32
    %c0_i32_4 = arith.constant 0 : i32
    %18 = arith.cmpi ne, %17, %c0_i32_4 : i32
    scf.if %18 {
      %c0 = arith.constant 0 : index
      %c0_5 = arith.constant 0 : index
      %19 = vector.load %arg6[%c0, %c0_5] : memref<256x1xi32, #tpu.memory_space<vmem>>, vector<256x1xi32>
      %20 = vector.broadcast %19 : vector<256x1xi32> to vector<256x256xi32>
      %21 = vector.broadcast %7 : vector<1x256xi32> to vector<256x256xi32>
      %22 = arith.cmpi eq, %20, %21 : vector<256x256xi32>
      %23 = arith.extui %22 : vector<256x256xi1> to vector<256x256xi32>
      %24 = arith.sitofp %23 : vector<256x256xi32> to vector<256x256xf32>
      %c0_6 = arith.constant 0 : index
      %c0_7 = arith.constant 0 : index
      %25 = vector.load %arg8[%c0_6, %c0_7] : memref<32x256xf32, #tpu.memory_space<vmem>>, vector<32x256xf32>
      %cst = arith.constant dense<0.000000e+00> : vector<32x256xf32>
      %26 = tpu.matmul %25, %24, %cst {dimension_numbers = #tpu.dot_dimension_numbers<[1], [0], [0], [1], [0, 0, 1, 1], [], []>} : vector<32x256xf32>, vector<256x256xf32>, vector<32x256xf32> -> vector<32x256xf32>
      %c0_8 = arith.constant 0 : index
      %c0_9 = arith.constant 0 : index
      %c0_10 = arith.constant 0 : index
      %27 = vector.load %arg9[%c0_8, %c0_9, %c0_10] : memref<1x32x256xf32, #tpu.memory_space<vmem>>, vector<1x32x256xf32>
      %28 = vector.shape_cast %26 : vector<32x256xf32> to vector<1x32x256xf32>
      %29 = arith.addf %27, %28 : vector<1x32x256xf32>
      %c0_11 = arith.constant 0 : index
      %c0_12 = arith.constant 0 : index
      %c0_13 = arith.constant 0 : index
      %30 = vector.load %arg9[%c0_11, %c0_12, %c0_13] : memref<1x32x256xf32, #tpu.memory_space<vmem>>, vector<1x32x256xf32>
      tpu.vector_store %arg9[%c0_11, %c0_12, %c0_13], %29 {strides = array<i32>} : memref<1x32x256xf32, #tpu.memory_space<vmem>>, vector<1x32x256xf32>,
    } else {
    }
    return
  }
  func.func @transform_0(%arg0: i32, %arg1: i32, %arg2: memref<2xi32, #tpu.memory_space<smem>>, %arg3: memref<2xi32, #tpu.memory_space<smem>>, %arg4: memref<2xi32, #tpu.memory_space<smem>>) -> (i32, i32) {
    %c1_i32 = arith.constant 1 : i32
    %0 = arith.muli %arg0, %c1_i32 : i32
    %1 = arith.addi %0, %arg1 : i32
    %2 = arith.index_cast %1 : i32 to index
    %3 = memref.load %arg2[%2] : memref<2xi32, #tpu.memory_space<smem>>
    %c0_i32 = arith.constant 0 : i32
    %c0_i32_0 = arith.constant 0 : i32
    return %3, %c0_i32 : i32, i32
  }
  func.func @transform_1(%arg0: i32, %arg1: i32, %arg2: memref<2xi32, #tpu.memory_space<smem>>, %arg3: memref<2xi32, #tpu.memory_space<smem>>, %arg4: memref<2xi32, #tpu.memory_space<smem>>) -> (i32, i32) {
    %c1_i32 = arith.constant 1 : i32
    %0 = arith.muli %arg0, %c1_i32 : i32
    %1 = arith.addi %0, %arg1 : i32
    %2 = arith.index_cast %1 : i32 to index
    %3 = memref.load %arg2[%2] : memref<2xi32, #tpu.memory_space<smem>>
    %c1_i32_0 = arith.constant 1 : i32
    %4 = arith.addi %3, %c1_i32_0 : i32
    %c0_i32 = arith.constant 0 : i32
    %c0_i32_1 = arith.constant 0 : i32
    return %4, %c0_i32 : i32, i32
  }
  func.func @transform_2(%arg0: i32, %arg1: i32, %arg2: memref<2xi32, #tpu.memory_space<smem>>, %arg3: memref<2xi32, #tpu.memory_space<smem>>, %arg4: memref<2xi32, #tpu.memory_space<smem>>) -> (i32, i32) {
    %c1_i32 = arith.constant 1 : i32
    %0 = arith.muli %arg0, %c1_i32 : i32
    %1 = arith.addi %0, %arg1 : i32
    %2 = arith.index_cast %1 : i32 to index
    %3 = memref.load %arg2[%2] : memref<2xi32, #tpu.memory_space<smem>>
    %c0_i32 = arith.constant 0 : i32
    %c0_i32_0 = arith.constant 0 : i32
    return %c0_i32, %3 : i32, i32
  }
  func.func @transform_3(%arg0: i32, %arg1: i32, %arg2: memref<2xi32, #tpu.memory_space<smem>>, %arg3: memref<2xi32, #tpu.memory_space<smem>>, %arg4: memref<2xi32, #tpu.memory_space<smem>>) -> (i32, i32) {
    %c1_i32 = arith.constant 1 : i32
    %0 = arith.muli %arg0, %c1_i32 : i32
    %1 = arith.addi %0, %arg1 : i32
    %2 = arith.index_cast %1 : i32 to index
    %3 = memref.load %arg2[%2] : memref<2xi32, #tpu.memory_space<smem>>
    %c1_i32_0 = arith.constant 1 : i32
    %4 = arith.addi %3, %c1_i32_0 : i32
    %c0_i32 = arith.constant 0 : i32
    %c0_i32_1 = arith.constant 0 : i32
    return %c0_i32, %4 : i32, i32
  }
  func.func @transform_4(%arg0: i32, %arg1: i32, %arg2: memref<2xi32, #tpu.memory_space<smem>>, %arg3: memref<2xi32, #tpu.memory_space<smem>>, %arg4: memref<2xi32, #tpu.memory_space<smem>>) -> (i32, i32, i32) {
    %c0_i32 = arith.constant 0 : i32
    %c0_i32_0 = arith.constant 0 : i32
    return %arg0, %c0_i32, %arg1 : i32, i32, i32
  }
}

</mosaic_0001>

<llo_original>
// kernel: tpu_custom_call.1
$region0: #{tpu_custom_call.1}
  #allocation0 [shape = 'u32[]', space=smem, size = 0x4, offset = 0x4, fixed_abs, tag = 'smem constant byte address 0x4 - core index']
  #allocation1 [shape = 'u32[144,128]{1,0:T(1,128)}', space=vmem, size = 0x12000, scoped, tag = 'internal scratch']
  #allocation2 [shape = 's32[1]{0}', space=sflag, size = 0x4, scoped, tag = 'scoped memory for tpu_custom_call.1']
  #allocation3 [shape = 'u8[512]{0}', space=smem, size = 0x200, scoped, tag = 'prefetched SMEM operand 0']
  #allocation4 [shape = 'u8[512]{0}', space=smem, size = 0x200, scoped, tag = 'prefetched SMEM operand 1']
  #allocation5 [shape = 'u8[512]{0}', space=smem, size = 0x200, scoped, tag = 'prefetched SMEM operand 2']
  %s0 = inlined_call_operand.vmem [shape: s32[2], index: 0, kind: input, shape index: {}]
  %s1 = inlined_call_operand.vmem [shape: s32[2], index: 1, kind: input, shape index: {}]
  %s2 = inlined_call_operand.vmem [shape: s32[2], index: 2, kind: input, shape index: {}]
  %s3 = inlined_call_operand.vmem [shape: s32[512,1], index: 3, kind: input, shape index: {}]
  %s4 = inlined_call_operand.vmem [shape: s32[512,1], index: 4, kind: input, shape index: {}]
  %s5 = inlined_call_operand.vmem [shape: f32[32,512], index: 5, kind: input, shape index: {}]
  %s6 = inlined_call_operand.vmem [shape: f32[32,512], index: 6, kind: input, shape index: {}]
  %s7 = inlined_call_operand.hbm [shape: f32[2,32,256], index: 7, kind: output, shape index: {}]
  %s8 = sld [smem:[#allocation0]]
  $region107: #{tpu_custom_call.1} parent=0
    _
  %s10 = ssub.s32 1, %s8
  %s11 = scalar_select 0, %s10, %s8
  %s12 = sshll.u32 %s0, 4
  %s13 = int_to_ptr.vmem [resolvable:$true] %s12
  %15 = dma.vmem_to_smem %s13, 16, [#allocation3], [#allocation2]
  %s16 = sshll.u32 %s1, 4
  %s17 = int_to_ptr.vmem [resolvable:$true] %s16
  %19 = dma.vmem_to_smem %s17, 16, [#allocation4], [#allocation2]
  %s20 = sshll.u32 %s2, 4
  %s21 = int_to_ptr.vmem [resolvable:$true] %s20
  %23 = dma.vmem_to_smem %s21, 16, [#allocation5], [#allocation2]
  %24 = dma.done [#allocation2], 48
  %25 = sfence
  $region1: #{tpu_custom_call.1} parent=0
    #allocation6 [shape = 'u8[65536]{0}', space=vmem, size = 0x10000, scoped, tag = 'input window, operand 5']
    #allocation7 [shape = 'u8[65536]{0}', space=vmem, size = 0x10000, scoped, tag = 'input window, operand 6']
    #allocation8 [shape = 'u8[65536]{0}', space=vmem, size = 0x10000, scoped, tag = 'output window, operand 0']
    #allocation9 [shape = 's32[2]{0}', space=sflag, size = 0x8, scoped, tag = 'scoped memory for tpu_custom_call.1']
    %26 = vsyncpa [#allocation9], 0
    %s27 = scalar_lea.sflag [#allocation9], 1
    %28 = vsyncpa %s27, 0
    loop: start=0, step=1, limit=4
    $region2: #{tpu_custom_call.1} parent=1 // loop_pre_header
      _
    $region3: #{tpu_custom_call.1} parent=1 // loop_header
      %s30 = sphi 0, %s34
      %p31 = scmp.ge.s32.totalorder %s30, 4
      %s37 = sphi 0, %s49
      %s38 = sphi 0, %s45
      %s39 = sphi 0, %s37
      %s40 = sphi 0, %s38
      %s41 = sphi 0, %s39
      %s42 = sphi 0, %s40
      %s56 = sphi 0, %s58
      %s59 = sphi 0, %s56
      %s60 = sphi 0, %s59
      %s76 = sphi 0, %s60
      %s88 = sphi 0, %s90
      %s91 = sphi 0, %s88
      %s92 = sphi 0, %s91
      %s108 = sphi 0, %s92
      %s118 = sphi 0, %s120
      %s121 = sphi 0, %s118
      %s122 = sphi 0, %s121
      %s138 = sphi 0, %s122
      %s150 = sphi 0, %s152
      %s153 = sphi 0, %s150
      %s154 = sphi 0, %s153
      %s170 = sphi 0, %s154
      %s178 = sphi 0, %s180
      %s181 = sphi 0, %s178
      %s182 = sphi 0, %s181
      %s198 = sphi 0, %s182
    $region4: #{tpu_custom_call.1} parent=1 // loop_header_branch
      %33 = sbr.rel (%p31) target = $region8
    $region5: #{tpu_custom_call.1} parent=1 // loop_body
      %s35 = ssub.s32 %s30, 1
      %s36 = ssub.s32 %s30, 2
      %s43 = sadd.s32 1, %s38
      %p44 = scmp.ge.s32.totalorder %s43, 1
      %s45 = scalar_select %p44, 0, %s43
      %s46 = sadd.s32 1, %s37
      %s47 = scalar_select %p44, %s46, %s37
      %p48 = scmp.ge.s32.totalorder %s47, 2
      %s49 = scalar_select %p48, 0, %s47
      %s50 = sadd.s32 %s37, %s38
      %s51 = sld [smem:[#allocation3 + %s50]]
      %s52 = sadd.s32 %s49, %s45
      %s53 = sld [smem:[#allocation3 + %s52]]
      %s54 = ssub.s32 %s51, %s53
      %p55 = scmp.eq.s32.totalorder %s54, 0
      %s57 = sadd.s32 %s56, 1
      %s58 = scalar_select %p55, %s56, %s57
      %p61 = pneg %p55
      %p62 = scmp.eq.s32.totalorder %s30, 1
      %p63 = por %p61, %p62
      %p64 = scmp.ne.s32.totalorder %s56, %s59
      %p65 = scmp.eq.s32.totalorder %s30, 0
      %p66 = por %p64, %p65
      %p67 = scmp.ne.s32.totalorder %s56, %s59
      %p68 = scmp.eq.s32.totalorder %s35, 1
      %p69 = por %p67, %p68
      %p70 = scmp.ne.s32.totalorder %s59, %s60
      %p71 = scmp.eq.s32.totalorder %s35, 0
      %p72 = por %p70, %p71
      %p73 = scmp.ne.s32.totalorder %s59, %s60
      %p74 = scmp.eq.s32.totalorder %s36, 1
      %p75 = por %p73, %p74
      %p77 = scmp.ne.s32.totalorder %s60, %s76
      %p78 = scmp.eq.s32.totalorder %s36, 0
      %p79 = por %p77, %p78
      %s80 = sadd.s32 %s37, %s38
      %s81 = sld [smem:[#allocation3 + %s80]]
      %s82 = sadd.s32 %s81, 1
      %s83 = sadd.s32 %s49, %s45
      %s84 = sld [smem:[#allocation3 + %s83]]
      %s85 = sadd.s32 %s84, 1
      %s86 = ssub.s32 %s82, %s85
      %p87 = scmp.eq.s32.totalorder %s86, 0
      %s89 = sadd.s32 %s88, 1
      %s90 = scalar_select %p87, %s88, %s89
      %p93 = pneg %p87
      %p94 = scmp.eq.s32.totalorder %s30, 1
      %p95 = por %p93, %p94
      %p96 = scmp.ne.s32.totalorder %s88, %s91
      %p97 = scmp.eq.s32.totalorder %s30, 0
      %p98 = por %p96, %p97
      %p99 = scmp.ne.s32.totalorder %s88, %s91
      %p100 = scmp.eq.s32.totalorder %s35, 1
      %p101 = por %p99, %p100
      %p102 = scmp.ne.s32.totalorder %s91, %s92
      %p103 = scmp.eq.s32.totalorder %s35, 0
      %p104 = por %p102, %p103
      %p105 = scmp.ne.s32.totalorder %s91, %s92
      %p106 = scmp.eq.s32.totalorder %s36, 1
      %p107 = por %p105, %p106
      %p109 = scmp.ne.s32.totalorder %s92, %s108
      %p110 = scmp.eq.s32.totalorder %s36, 0
      %p111 = por %p109, %p110
      %s112 = sadd.s32 %s37, %s38
      %s113 = sld [smem:[#allocation3 + %s112]]
      %s114 = sadd.s32 %s49, %s45
      %s115 = sld [smem:[#allocation3 + %s114]]
      %s116 = ssub.s32 %s113, %s115
      %p117 = scmp.eq.s32.totalorder %s116, 0
      %s119 = sadd.s32 %s118, 1
      %s120 = scalar_select %p117, %s118, %s119
      %p123 = pneg %p117
      %p124 = scmp.eq.s32.totalorder %s30, 1
      %p125 = por %p123, %p124
      %p126 = scmp.ne.s32.totalorder %s118, %s121
      %p127 = scmp.eq.s32.totalorder %s30, 0
      %p128 = por %p126, %p127
      %p129 = scmp.ne.s32.totalorder %s118, %s121
      %p130 = scmp.eq.s32.totalorder %s35, 1
      %p131 = por %p129, %p130
      %p132 = scmp.ne.s32.totalorder %s121, %s122
      %p133 = scmp.eq.s32.totalorder %s35, 0
      %p134 = por %p132, %p133
      %p135 = scmp.ne.s32.totalorder %s121, %s122
      %p136 = scmp.eq.s32.totalorder %s36, 1
      %p137 = por %p135, %p136
      %p139 = scmp.ne.s32.totalorder %s122, %s138
      %p140 = scmp.eq.s32.totalorder %s36, 0
      %p141 = por %p139, %p140
      %s142 = sadd.s32 %s37, %s38
      %s143 = sld [smem:[#allocation3 + %s142]]
      %s144 = sadd.s32 %s143, 1
      %s145 = sadd.s32 %s49, %s45
      %s146 = sld [smem:[#allocation3 + %s145]]
      %s147 = sadd.s32 %s146, 1
      %s148 = ssub.s32 %s144, %s147
      %p149 = scmp.eq.s32.totalorder %s148, 0
      %s151 = sadd.s32 %s150, 1
      %s152 = scalar_select %p149, %s150, %s151
      %p155 = pneg %p149
      %p156 = scmp.eq.s32.totalorder %s30, 1
      %p157 = por %p155, %p156
      %p158 = scmp.ne.s32.totalorder %s150, %s153
      %p159 = scmp.eq.s32.totalorder %s30, 0
      %p160 = por %p158, %p159
      %p161 = scmp.ne.s32.totalorder %s150, %s153
      %p162 = scmp.eq.s32.totalorder %s35, 1
      %p163 = por %p161, %p162
      %p164 = scmp.ne.s32.totalorder %s153, %s154
      %p165 = scmp.eq.s32.totalorder %s35, 0
      %p166 = por %p164, %p165
      %p167 = scmp.ne.s32.totalorder %s153, %s154
      %p168 = scmp.eq.s32.totalorder %s36, 1
      %p169 = por %p167, %p168
      %p171 = scmp.ne.s32.totalorder %s154, %s170
      %p172 = scmp.eq.s32.totalorder %s36, 0
      %p173 = por %p171, %p172
      %s174 = ssub.s32 %s37, %s49
      %s175 = ssub.s32 %s38, %s45
      %s176 = sor.u32 %s174, %s175
      %p177 = scmp.eq.s32.totalorder %s176, 0
      %s179 = sadd.s32 %s178, 1
      %s180 = scalar_select %p177, %s178, %s179
      %p183 = pneg %p177
      %p184 = scmp.eq.s32.totalorder %s30, 1
      %p185 = por %p183, %p184
      %p186 = scmp.ne.s32.totalorder %s178, %s181
      %p187 = scmp.eq.s32.totalorder %s30, 0
      %p188 = por %p186, %p187
      %p189 = scmp.ne.s32.totalorder %s178, %s181
      %p190 = scmp.eq.s32.totalorder %s35, 1
      %p191 = por %p189, %p190
      %p192 = scmp.ne.s32.totalorder %s181, %s182
      %p193 = scmp.eq.s32.totalorder %s35, 0
      %p194 = por %p192, %p193
      %p195 = scmp.ne.s32.totalorder %s181, %s182
      %p196 = scmp.eq.s32.totalorder %s36, 1
      %p197 = por %p195, %p196
      %p199 = scmp.ne.s32.totalorder %s182, %s198
      %p200 = scmp.eq.s32.totalorder %s36, 0
      %p201 = por %p199, %p200
      %p202 = scmp.le.s32.totalorder 1, %s30
      %p203 = scmp.lt.s32.totalorder %s30, 3
      %p204 = pnand %p202, %p203
      %p205 = pneg %p204
      // Predicated region
      $region9: #{tpu_custom_call.1} parent=5 // pred_check
        _
      $region10: #{tpu_custom_call.1} parent=5 // pred_check_branch
        %207 = sbr.rel (%p204) target = $region12
      $region11: #{tpu_custom_call.1} parent=5 // pred_region
        %s208 = ssub.s32 %s30, 1
      $region12: #{tpu_custom_call.1} parent=5 // pred_fallthru
        _
      %p209 = scmp.lt.s32.totalorder %s30, 2
      // Predicated region
      $region13: #{tpu_custom_call.1} parent=5 // pred_check
        %p210 = pneg %p209
      $region14: #{tpu_custom_call.1} parent=5 // pred_check_branch
        %212 = sbr.rel (%p210) target = $region16
      $region15: #{tpu_custom_call.1} parent=5 // pred_region
        // Predicated region
        $region17: #{tpu_custom_call.1} parent=15 // pred_check
          %p213 = pneg %p66
        $region18: #{tpu_custom_call.1} parent=15 // pred_check_branch
          %215 = sbr.rel (%p213) target = $region20
        $region19: #{tpu_custom_call.1} parent=15 // pred_region
          %s216 = sadd.s32 %s37, %s38
          %s217 = sld [smem:[#allocation3 + %s216]]
          %s218 = smul.u32 32, %s217
          %p219 = scmp.lt.s32.totalorder %s218, 63
          %s220 = scalar_select %p219, %s218, 63
          %s221 = smul.addr %s220, 8
          %s222 = scalar_lea.vmem %s3, %s221
          %s223 = sadd.s32 %s37, %s38
          %s224 = sld [smem:[#allocation3 + %s223]]
          %s225 = smul.u32 32, %s224
        $region20: #{tpu_custom_call.1} parent=15 // pred_fallthru
          _
        // Predicated region
        $region21: #{tpu_custom_call.1} parent=15 // pred_check
          %p226 = pneg %p98
        $region22: #{tpu_custom_call.1} parent=15 // pred_check_branch
          %228 = sbr.rel (%p226) target = $region24
        $region23: #{tpu_custom_call.1} parent=15 // pred_region
          %s229 = sadd.s32 %s37, %s38
          %s230 = sld [smem:[#allocation3 + %s229]]
          %s231 = sadd.s32 %s230, 1
          %s232 = smul.u32 32, %s231
          %p233 = scmp.lt.s32.totalorder %s232, 63
          %s234 = scalar_select %p233, %s232, 63
          %s235 = smul.addr %s234, 8
          %s236 = scalar_lea.vmem %s4, %s235
          %s237 = sadd.s32 %s37, %s38
          %s238 = sld [smem:[#allocation3 + %s237]]
          %s239 = sadd.s32 %s238, 1
          %s240 = smul.u32 32, %s239
        $region24: #{tpu_custom_call.1} parent=15 // pred_fallthru
          _
        // Predicated region
        $region25: #{tpu_custom_call.1} parent=15 // pred_check
          %p241 = pneg %p128
        $region26: #{tpu_custom_call.1} parent=15 // pred_check_branch
          %243 = sbr.rel (%p241) target = $region28
        $region27: #{tpu_custom_call.1} parent=15 // pred_region
          %s244 = sand.u32 %s118, 1
          %s245 = sand.u32 %s118, 1
          %s246 = smul.addr %s245, 64
          %s247 = scalar_lea.vmem [#allocation6], %s246
          %s248 = sadd.s32 %s37, %s38
          %s249 = sld [smem:[#allocation3 + %s248]]
          %s250 = smul.u32 2, %s249
          %s251 = smul.addr %s250, 8
          %s252 = scalar_lea.vmem %s5, %s251
          // Predicated region
          $region29: #{tpu_custom_call.1} parent=27 // pred_check
            _
          $region30: #{tpu_custom_call.1} parent=27 // pred_check_branch
            %254 = sbr.rel (0) target = $region32
          $region31: #{tpu_custom_call.1} parent=27 // pred_region
            // Predicated region
            $region33: #{tpu_custom_call.1} parent=31 // pred_check
              _
            $region34: #{tpu_custom_call.1} parent=31 // pred_check_branch
              %256 = sbr.rel (0) target = $region36
            $region35: #{tpu_custom_call.1} parent=31 // pred_region
              loop: start=0, step=1, limit=1
              $region37: #{tpu_custom_call.1} parent=35 // loop_pre_header
                _
              $region38: #{tpu_custom_call.1} parent=35 // loop_header
                %s258 = sphi 0, %s262
                %p259 = scmp.ge.s32.totalorder %s258, 1
                %s263 = sphi %s252, %s252
                %s264 = sphi %s247, %s247
              $region39: #{tpu_custom_call.1} parent=35 // loop_header_branch
                %261 = sbr.rel (%p259) target = $region43
              $region40: #{tpu_custom_call.1} parent=35 // loop_body
                %v265 = vld [vmem:[%s263] sm:$0xff]
                %266 = vst [vmem:[%s264] sm:$0xff] %v265
                %v267 = vld [vmem:[%s263 + $0x8] sm:$0xff]
                %268 = vst [vmem:[%s264 + $0x8] sm:$0xff] %v267
                %v269 = vld [vmem:[%s263 + $0x20] sm:$0xff]
                %270 = vst [vmem:[%s264 + $0x10] sm:$0xff] %v269
                %v271 = vld [vmem:[%s263 + $0x28] sm:$0xff]
                %272 = vst [vmem:[%s264 + $0x18] sm:$0xff] %v271
                %v273 = vld [vmem:[%s263 + $0x40] sm:$0xff]
                %274 = vst [vmem:[%s264 + $0x20] sm:$0xff] %v273
                %v275 = vld [vmem:[%s263 + $0x48] sm:$0xff]
                %276 = vst [vmem:[%s264 + $0x28] sm:$0xff] %v275
                %v277 = vld [vmem:[%s263 + $0x60] sm:$0xff]
                %278 = vst [vmem:[%s264 + $0x30] sm:$0xff] %v277
                %v279 = vld [vmem:[%s263 + $0x68] sm:$0xff]
                %280 = vst [vmem:[%s264 + $0x38] sm:$0xff] %v279
              $region41: #{tpu_custom_call.1} parent=35 // loop_footer
                %s262 = sadd.s32 1, %s258
              $region42: #{tpu_custom_call.1} parent=35 // loop_footer_branch
                %257 = sbr.rel target = $region38
              $region43: #{tpu_custom_call.1} parent=35 // loop_exit
                _
            $region36: #{tpu_custom_call.1} parent=31 // pred_fallthru
              _
            // Predicated region
            $region44: #{tpu_custom_call.1} parent=31 // pred_check
              _
            $region45: #{tpu_custom_call.1} parent=31 // pred_check_branch
              %282 = sbr.rel target = $region47
            $region46: #{tpu_custom_call.1} parent=31 // pred_region
              _
            $region47: #{tpu_custom_call.1} parent=31 // pred_fallthru
              _
          $region32: #{tpu_custom_call.1} parent=27 // pred_fallthru
            _
          %283 = vnop
        $region28: #{tpu_custom_call.1} parent=15 // pred_fallthru
          _
        // Predicated region
        $region48: #{tpu_custom_call.1} parent=15 // pred_check
          %p284 = pneg %p160
        $region49: #{tpu_custom_call.1} parent=15 // pred_check_branch
          %286 = sbr.rel (%p284) target = $region51
        $region50: #{tpu_custom_call.1} parent=15 // pred_region
          %s287 = sand.u32 %s150, 1
          %s288 = sand.u32 %s150, 1
          %s289 = smul.addr %s288, 64
          %s290 = scalar_lea.vmem [#allocation7], %s289
          %s291 = sadd.s32 %s37, %s38
          %s292 = sld [smem:[#allocation3 + %s291]]
          %s293 = sadd.s32 %s292, 1
          %s294 = smul.u32 2, %s293
          %s295 = smul.addr %s294, 8
          %s296 = scalar_lea.vmem %s6, %s295
          // Predicated region
          $region52: #{tpu_custom_call.1} parent=50 // pred_check
            _
          $region53: #{tpu_custom_call.1} parent=50 // pred_check_branch
            %298 = sbr.rel (0) target = $region55
          $region54: #{tpu_custom_call.1} parent=50 // pred_region
            // Predicated region
            $region56: #{tpu_custom_call.1} parent=54 // pred_check
              _
            $region57: #{tpu_custom_call.1} parent=54 // pred_check_branch
              %300 = sbr.rel (0) target = $region59
            $region58: #{tpu_custom_call.1} parent=54 // pred_region
              loop: start=0, step=1, limit=1
              $region60: #{tpu_custom_call.1} parent=58 // loop_pre_header
                _
              $region61: #{tpu_custom_call.1} parent=58 // loop_header
                %s302 = sphi 0, %s306
                %p303 = scmp.ge.s32.totalorder %s302, 1
                %s307 = sphi %s296, %s296
                %s308 = sphi %s290, %s290
              $region62: #{tpu_custom_call.1} parent=58 // loop_header_branch
                %305 = sbr.rel (%p303) target = $region66
              $region63: #{tpu_custom_call.1} parent=58 // loop_body
                %v309 = vld [vmem:[%s307] sm:$0xff]
                %310 = vst [vmem:[%s308] sm:$0xff] %v309
                %v311 = vld [vmem:[%s307 + $0x8] sm:$0xff]
                %312 = vst [vmem:[%s308 + $0x8] sm:$0xff] %v311
                %v313 = vld [vmem:[%s307 + $0x20] sm:$0xff]
                %314 = vst [vmem:[%s308 + $0x10] sm:$0xff] %v313
                %v315 = vld [vmem:[%s307 + $0x28] sm:$0xff]
                %316 = vst [vmem:[%s308 + $0x18] sm:$0xff] %v315
                %v317 = vld [vmem:[%s307 + $0x40] sm:$0xff]
                %318 = vst [vmem:[%s308 + $0x20] sm:$0xff] %v317
                %v319 = vld [vmem:[%s307 + $0x48] sm:$0xff]
                %320 = vst [vmem:[%s308 + $0x28] sm:$0xff] %v319
                %v321 = vld [vmem:[%s307 + $0x60] sm:$0xff]
                %322 = vst [vmem:[%s308 + $0x30] sm:$0xff] %v321
                %v323 = vld [vmem:[%s307 + $0x68] sm:$0xff]
                %324 = vst [vmem:[%s308 + $0x38] sm:$0xff] %v323
              $region64: #{tpu_custom_call.1} parent=58 // loop_footer
                %s306 = sadd.s32 1, %s302
              $region65: #{tpu_custom_call.1} parent=58 // loop_footer_branch
                %301 = sbr.rel target = $region61
              $region66: #{tpu_custom_call.1} parent=58 // loop_exit
                _
            $region59: #{tpu_custom_call.1} parent=54 // pred_fallthru
              _
            // Predicated region
            $region67: #{tpu_custom_call.1} parent=54 // pred_check
              _
            $region68: #{tpu_custom_call.1} parent=54 // pred_check_branch
              %326 = sbr.rel target = $region70
            $region69: #{tpu_custom_call.1} parent=54 // pred_region
              _
            $region70: #{tpu_custom_call.1} parent=54 // pred_fallthru
              _
          $region55: #{tpu_custom_call.1} parent=50 // pred_fallthru
            _
          %327 = vnop
        $region51: #{tpu_custom_call.1} parent=15 // pred_fallthru
          _
      $region16: #{tpu_custom_call.1} parent=5 // pred_fallthru
        _
      %p328 = scmp.le.s32.totalorder 1, %s30
      %p329 = scmp.lt.s32.totalorder %s30, 3
      %p330 = pnand %p328, %p329
      %p331 = pneg %p330
      // Predicated region
      $region71: #{tpu_custom_call.1} parent=5 // pred_check
        _
      $region72: #{tpu_custom_call.1} parent=5 // pred_check_branch
        %333 = sbr.rel (%p330) target = $region74
      $region73: #{tpu_custom_call.1} parent=5 // pred_region
        %s334 = ssub.s32 %s30, 1
        %s335 = sand.u32 %s121, 1
        %s336 = sand.u32 %s121, 1
        %s337 = smul.addr %s336, 64
        %s338 = scalar_lea.vmem [#allocation6], %s337
        // Predicated region
        $region75: #{tpu_custom_call.1} parent=73 // pred_check
          %p339 = pneg %p134
        $region76: #{tpu_custom_call.1} parent=73 // pred_check_branch
          %341 = sbr.rel (%p339) target = $region78
        $region77: #{tpu_custom_call.1} parent=73 // pred_region
          _
        $region78: #{tpu_custom_call.1} parent=73 // pred_fallthru
          _
        %s342 = sand.u32 %s153, 1
        %s343 = sand.u32 %s153, 1
        %s344 = smul.addr %s343, 64
        %s345 = scalar_lea.vmem [#allocation7], %s344
        // Predicated region
        $region79: #{tpu_custom_call.1} parent=73 // pred_check
          %p346 = pneg %p166
        $region80: #{tpu_custom_call.1} parent=73 // pred_check_branch
          %348 = sbr.rel (%p346) target = $region82
        $region81: #{tpu_custom_call.1} parent=73 // pred_region
          _
        $region82: #{tpu_custom_call.1} parent=73 // pred_fallthru
          _
        %s349 = sadd.s32 %s39, %s40
        %s350 = sld [smem:[#allocation3 + %s349]]
        %s351 = smul.u32 32, %s350
        %p352 = scmp.lt.s32.totalorder %s351, 63
        %s353 = scalar_select %p352, %s351, 63
        %s354 = smul.addr %s353, 8
        %s355 = scalar_lea.vmem %s3, %s354
        %p356 = pneg %p72
        %p357 = pneg %p69
        %s358 = sadd.s32 %s39, %s40
        %s359 = sld [smem:[#allocation3 + %s358]]
        %s360 = sadd.s32 %s359, 1
        %s361 = smul.u32 32, %s360
        %p362 = scmp.lt.s32.totalorder %s361, 63
        %s363 = scalar_select %p362, %s361, 63
        %s364 = smul.addr %s363, 8
        %s365 = scalar_lea.vmem %s4, %s364
        %p366 = pneg %p104
        %p367 = pneg %p101
        %s368 = sand.u32 %s121, 1
        %s369 = sand.u32 %s121, 1
        %s370 = smul.addr %s369, 64
        %s371 = scalar_lea.vmem [#allocation6], %s370
        %p372 = pneg %p134
        %p373 = pneg %p131
        %s374 = sand.u32 %s153, 1
        %s375 = sand.u32 %s153, 1
        %s376 = smul.addr %s375, 64
        %s377 = scalar_lea.vmem [#allocation7], %s376
        %p378 = pneg %p166
        %p379 = pneg %p163
        %p380 = pneg %p194
        %p381 = pneg %p191
        %s382 = sand.u32 %s181, 1
        %s383 = scalar_lea.sflag [#allocation9], %s382
        %s384 = sand.u32 %s181, 1
        %s385 = smul.addr %s384, 64
        %s386 = scalar_lea.vmem [#allocation8], %s385
        %s387 = sadd.s32 %s39, %s40
        %s388 = sld [smem:[#allocation3 + %s387]]
        %s389 = smul.u32 32, %s388
        %p390 = scmp.lt.s32.totalorder %s389, 63
        %s391 = scalar_select %p390, %s389, 63
        %s392 = smul.addr %s391, 8
        %s393 = scalar_lea.vmem %s3, %s392
        %s394 = sadd.s32 %s39, %s40
        %s395 = sld [smem:[#allocation3 + %s394]]
        %s396 = smul.u32 32, %s395
        %s397 = sadd.s32 %s39, %s40
        %s398 = sld [smem:[#allocation3 + %s397]]
        %s399 = sadd.s32 %s398, 1
        %s400 = smul.u32 32, %s399
        %p401 = scmp.lt.s32.totalorder %s400, 63
        %s402 = scalar_select %p401, %s400, 63
        %s403 = smul.addr %s402, 8
        %s404 = scalar_lea.vmem %s4, %s403
        %s405 = sadd.s32 %s39, %s40
        %s406 = sld [smem:[#allocation3 + %s405]]
        %s407 = sadd.s32 %s406, 1
        %s408 = smul.u32 32, %s407
        %s409 = sadd.s32 %s39, %s40
        %s410 = sld [smem:[#allocation3 + %s409]]
        %s411 = smul.u32 2, %s410
        %s412 = sadd.s32 %s39, %s40
        %s413 = sld [smem:[#allocation3 + %s412]]
        %s414 = sadd.s32 %s413, 1
        %s415 = smul.u32 2, %s414
        %s416 = smul.u32 2, %s40
        %s417 = sadd.s32 %s39, %s40
        %s418 = sld [smem:[#allocation4 + %s417]]
        %s419 = smul.u32 %s417, 256
        %v420 = vlaneseq
        %v421 = vand.u32 %v420, 127
        %v422 = vadd.s32 %v421, 128
        %v423 = vstv %s419
        %v424 = vadd.s32 %v421, %v423
        %v425 = vadd.s32 %v422, %v423
        %p426 = scmp.eq.s32.totalorder %s418, 0
        // Predicated region
        $region83: #{tpu_custom_call.1} parent=73 // pred_check
          %p427 = pneg %p426
        $region84: #{tpu_custom_call.1} parent=73 // pred_check_branch
          %429 = sbr.rel (%p427) target = $region86
        $region85: #{tpu_custom_call.1} parent=73 // pred_region
          %430 = vst [vmem:[%s386] sm:$0xff] 0.0
          %431 = vst [vmem:[%s386 + $0x8] sm:$0xff] 0.0
          %432 = vst [vmem:[%s386 + $0x10] sm:$0xff] 0.0
          %433 = vst [vmem:[%s386 + $0x18] sm:$0xff] 0.0
          %434 = vst [vmem:[%s386 + $0x20] sm:$0xff] 0.0
          %435 = vst [vmem:[%s386 + $0x28] sm:$0xff] 0.0
          %436 = vst [vmem:[%s386 + $0x30] sm:$0xff] 0.0
          %437 = vst [vmem:[%s386 + $0x38] sm:$0xff] 0.0
        $region86: #{tpu_custom_call.1} parent=73 // pred_fallthru
          _
        %p438 = scmp.gt.s32.totalorder %s418, 0
        // Predicated region
        $region87: #{tpu_custom_call.1} parent=73 // pred_check
          %p439 = pneg %p438
        $region88: #{tpu_custom_call.1} parent=73 // pred_check_branch
          %441 = sbr.rel (%p439) target = $region90
        $region89: #{tpu_custom_call.1} parent=73 // pred_region
          %v442 = vld [vmem:[%s393] sm:$0xff]
          %v443 = vld [vmem:[%s393 + $0x8] sm:$0xff]
          %v444 = vld [vmem:[%s393 + $0x10] sm:$0xff]
          %v445 = vld [vmem:[%s393 + $0x18] sm:$0xff]
          %v446 = vld [vmem:[%s393 + $0x20] sm:$0xff]
          %v447 = vld [vmem:[%s393 + $0x28] sm:$0xff]
          %v448 = vld [vmem:[%s393 + $0x30] sm:$0xff]
          %v449 = vld [vmem:[%s393 + $0x38] sm:$0xff]
          %v450 = vld [vmem:[%s393 + $0x40] sm:$0xff]
          %v451 = vld [vmem:[%s393 + $0x48] sm:$0xff]
          %v452 = vld [vmem:[%s393 + $0x50] sm:$0xff]
          %v453 = vld [vmem:[%s393 + $0x58] sm:$0xff]
          %v454 = vld [vmem:[%s393 + $0x60] sm:$0xff]
          %v455 = vld [vmem:[%s393 + $0x68] sm:$0xff]
          %v456 = vld [vmem:[%s393 + $0x70] sm:$0xff]
          %v457 = vld [vmem:[%s393 + $0x78] sm:$0xff]
          %v458 = vld [vmem:[%s393 + $0x80] sm:$0xff]
          %v459 = vld [vmem:[%s393 + $0x88] sm:$0xff]
          %v460 = vld [vmem:[%s393 + $0x90] sm:$0xff]
          %v461 = vld [vmem:[%s393 + $0x98] sm:$0xff]
          %v462 = vld [vmem:[%s393 + $0xa0] sm:$0xff]
          %v463 = vld [vmem:[%s393 + $0xa8] sm:$0xff]
          %v464 = vld [vmem:[%s393 + $0xb0] sm:$0xff]
          %v465 = vld [vmem:[%s393 + $0xb8] sm:$0xff]
          %v466 = vld [vmem:[%s393 + $0xc0] sm:$0xff]
          %v467 = vld [vmem:[%s393 + $0xc8] sm:$0xff]
          %v468 = vld [vmem:[%s393 + $0xd0] sm:$0xff]
          %v469 = vld [vmem:[%s393 + $0xd8] sm:$0xff]
          %v470 = vld [vmem:[%s393 + $0xe0] sm:$0xff]
          %v471 = vld [vmem:[%s393 + $0xe8] sm:$0xff]
          %v472 = vld [vmem:[%s393 + $0xf0] sm:$0xff]
          %v473 = vld [vmem:[%s393 + $0xf8] sm:$0xff]
          %474 = vset.pattern.permute.xlu0 0
          %475 = vperm.xlu0 %474, %v442
          %v476 = vpop.permute.xlu0 %475
          %477 = vset.pattern.permute.xlu0 0
          %478 = vperm.xlu0 %477, %v443
          %v479 = vpop.permute.xlu0 %478
          %480 = vset.pattern.permute.xlu0 0
          %481 = vperm.xlu0 %480, %v444
          %v482 = vpop.permute.xlu0 %481
          %483 = vset.pattern.permute.xlu0 0
          %484 = vperm.xlu0 %483, %v445
          %v485 = vpop.permute.xlu0 %484
          %486 = vset.pattern.permute.xlu0 0
          %487 = vperm.xlu0 %486, %v446
          %v488 = vpop.permute.xlu0 %487
          %489 = vset.pattern.permute.xlu0 0
          %490 = vperm.xlu0 %489, %v447
          %v491 = vpop.permute.xlu0 %490
          %492 = vset.pattern.permute.xlu0 0
          %493 = vperm.xlu0 %492, %v448
          %v494 = vpop.permute.xlu0 %493
          %495 = vset.pattern.permute.xlu0 0
          %496 = vperm.xlu0 %495, %v449
          %v497 = vpop.permute.xlu0 %496
          %498 = vset.pattern.permute.xlu0 0
          %499 = vperm.xlu0 %498, %v450
          %v500 = vpop.permute.xlu0 %499
          %501 = vset.pattern.permute.xlu0 0
          %502 = vperm.xlu0 %501, %v451
          %v503 = vpop.permute.xlu0 %502
          %504 = vset.pattern.permute.xlu0 0
          %505 = vperm.xlu0 %504, %v452
          %v506 = vpop.permute.xlu0 %505
          %507 = vset.pattern.permute.xlu0 0
          %508 = vperm.xlu0 %507, %v453
          %v509 = vpop.permute.xlu0 %508
          %510 = vset.pattern.permute.xlu0 0
          %511 = vperm.xlu0 %510, %v454
          %v512 = vpop.permute.xlu0 %511
          %513 = vset.pattern.permute.xlu0 0
          %514 = vperm.xlu0 %513, %v455
          %v515 = vpop.permute.xlu0 %514
          %516 = vset.pattern.permute.xlu0 0
          %517 = vperm.xlu0 %516, %v456
          %v518 = vpop.permute.xlu0 %517
          %519 = vset.pattern.permute.xlu0 0
          %520 = vperm.xlu0 %519, %v457
          %v521 = vpop.permute.xlu0 %520
          %522 = vset.pattern.permute.xlu0 0
          %523 = vperm.xlu0 %522, %v458
          %v524 = vpop.permute.xlu0 %523
          %525 = vset.pattern.permute.xlu0 0
          %526 = vperm.xlu0 %525, %v459
          %v527 = vpop.permute.xlu0 %526
          %528 = vset.pattern.permute.xlu0 0
          %529 = vperm.xlu0 %528, %v460
          %v530 = vpop.permute.xlu0 %529
          %531 = vset.pattern.permute.xlu0 0
          %532 = vperm.xlu0 %531, %v461
          %v533 = vpop.permute.xlu0 %532
          %534 = vset.pattern.permute.xlu0 0
          %535 = vperm.xlu0 %534, %v462
          %v536 = vpop.permute.xlu0 %535
          %537 = vset.pattern.permute.xlu0 0
          %538 = vperm.xlu0 %537, %v463
          %v539 = vpop.permute.xlu0 %538
          %540 = vset.pattern.permute.xlu0 0
          %541 = vperm.xlu0 %540, %v464
          %v542 = vpop.permute.xlu0 %541
          %543 = vset.pattern.permute.xlu0 0
          %544 = vperm.xlu0 %543, %v465
          %v545 = vpop.permute.xlu0 %544
          %546 = vset.pattern.permute.xlu0 0
          %547 = vperm.xlu0 %546, %v466
          %v548 = vpop.permute.xlu0 %547
          %549 = vset.pattern.permute.xlu0 0
          %550 = vperm.xlu0 %549, %v467
          %v551 = vpop.permute.xlu0 %550
          %552 = vset.pattern.permute.xlu0 0
          %553 = vperm.xlu0 %552, %v468
          %v554 = vpop.permute.xlu0 %553
          %555 = vset.pattern.permute.xlu0 0
          %556 = vperm.xlu0 %555, %v469
          %v557 = vpop.permute.xlu0 %556
          %558 = vset.pattern.permute.xlu0 0
          %559 = vperm.xlu0 %558, %v470
          %v560 = vpop.permute.xlu0 %559
          %561 = vset.pattern.permute.xlu0 0
          %562 = vperm.xlu0 %561, %v471
          %v563 = vpop.permute.xlu0 %562
          %564 = vset.pattern.permute.xlu0 0
          %565 = vperm.xlu0 %564, %v472
          %v566 = vpop.permute.xlu0 %565
          %567 = vset.pattern.permute.xlu0 0
          %568 = vperm.xlu0 %567, %v473
          %v569 = vpop.permute.xlu0 %568
          %vm570 = vcmp.eq.s32.totalorder %v476, %v424
          %vm571 = vcmp.eq.s32.totalorder %v476, %v425
          %vm572 = vcmp.eq.s32.totalorder %v479, %v424
          %vm573 = vcmp.eq.s32.totalorder %v479, %v425
          %vm574 = vcmp.eq.s32.totalorder %v482, %v424
          %vm575 = vcmp.eq.s32.totalorder %v482, %v425
          %vm576 = vcmp.eq.s32.totalorder %v485, %v424
          %vm577 = vcmp.eq.s32.totalorder %v485, %v425
          %vm578 = vcmp.eq.s32.totalorder %v488, %v424
          %vm579 = vcmp.eq.s32.totalorder %v488, %v425
          %vm580 = vcmp.eq.s32.totalorder %v491, %v424
          %vm581 = vcmp.eq.s32.totalorder %v491, %v425
          %vm582 = vcmp.eq.s32.totalorder %v494, %v424
          %vm583 = vcmp.eq.s32.totalorder %v494, %v425
          %vm584 = vcmp.eq.s32.totalorder %v497, %v424
          %vm585 = vcmp.eq.s32.totalorder %v497, %v425
          %vm586 = vcmp.eq.s32.totalorder %v500, %v424
          %vm587 = vcmp.eq.s32.totalorder %v500, %v425
          %vm588 = vcmp.eq.s32.totalorder %v503, %v424
          %vm589 = vcmp.eq.s32.totalorder %v503, %v425
          %vm590 = vcmp.eq.s32.totalorder %v506, %v424
          %vm591 = vcmp.eq.s32.totalorder %v506, %v425
          %vm592 = vcmp.eq.s32.totalorder %v509, %v424
          %vm593 = vcmp.eq.s32.totalorder %v509, %v425
          %vm594 = vcmp.eq.s32.totalorder %v512, %v424
          %vm595 = vcmp.eq.s32.totalorder %v512, %v425
          %vm596 = vcmp.eq.s32.totalorder %v515, %v424
          %vm597 = vcmp.eq.s32.totalorder %v515, %v425
          %vm598 = vcmp.eq.s32.totalorder %v518, %v424
          %vm599 = vcmp.eq.s32.totalorder %v518, %v425
          %vm600 = vcmp.eq.s32.totalorder %v521, %v424
          %vm601 = vcmp.eq.s32.totalorder %v521, %v425
          %vm602 = vcmp.eq.s32.totalorder %v524, %v424
          %vm603 = vcmp.eq.s32.totalorder %v524, %v425
          %vm604 = vcmp.eq.s32.totalorder %v527, %v424
          %vm605 = vcmp.eq.s32.totalorder %v527, %v425
          %vm606 = vcmp.eq.s32.totalorder %v530, %v424
          %vm607 = vcmp.eq.s32.totalorder %v530, %v425
          %vm608 = vcmp.eq.s32.totalorder %v533, %v424
          %vm609 = vcmp.eq.s32.totalorder %v533, %v425
          %vm610 = vcmp.eq.s32.totalorder %v536, %v424
          %vm611 = vcmp.eq.s32.totalorder %v536, %v425
          %vm612 = vcmp.eq.s32.totalorder %v539, %v424
          %vm613 = vcmp.eq.s32.totalorder %v539, %v425
          %vm614 = vcmp.eq.s32.totalorder %v542, %v424
          %vm615 = vcmp.eq.s32.totalorder %v542, %v425
          %vm616 = vcmp.eq.s32.totalorder %v545, %v424
          %vm617 = vcmp.eq.s32.totalorder %v545, %v425
          %vm618 = vcmp.eq.s32.totalorder %v548, %v424
          %vm619 = vcmp.eq.s32.totalorder %v548, %v425
          %vm620 = vcmp.eq.s32.totalorder %v551, %v424
          %vm621 = vcmp.eq.s32.totalorder %v551, %v425
          %vm622 = vcmp.eq.s32.totalorder %v554, %v424
          %vm623 = vcmp.eq.s32.totalorder %v554, %v425
          %vm624 = vcmp.eq.s32.totalorder %v557, %v424
          %vm625 = vcmp.eq.s32.totalorder %v557, %v425
          %vm626 = vcmp.eq.s32.totalorder %v560, %v424
          %vm627 = vcmp.eq.s32.totalorder %v560, %v425
          %vm628 = vcmp.eq.s32.totalorder %v563, %v424
          %vm629 = vcmp.eq.s32.totalorder %v563, %v425
          %vm630 = vcmp.eq.s32.totalorder %v566, %v424
          %vm631 = vcmp.eq.s32.totalorder %v566, %v425
          %vm632 = vcmp.eq.s32.totalorder %v569, %v424
          %vm633 = vcmp.eq.s32.totalorder %v569, %v425
          %v634 = vsel %vm570, 1, 0
          %v635 = vsel %vm571, 1, 0
          %v636 = vsel %vm572, 1, 0
          %v637 = vsel %vm573, 1, 0
          %v638 = vsel %vm574, 1, 0
          %v639 = vsel %vm575, 1, 0
          %v640 = vsel %vm576, 1, 0
          %v641 = vsel %vm577, 1, 0
          %v642 = vsel %vm578, 1, 0
          %v643 = vsel %vm579, 1, 0
          %v644 = vsel %vm580, 1, 0
          %v645 = vsel %vm581, 1, 0
          %v646 = vsel %vm582, 1, 0
          %v647 = vsel %vm583, 1, 0
          %v648 = vsel %vm584, 1, 0
          %v649 = vsel %vm585, 1, 0
          %v650 = vsel %vm586, 1, 0
          %v651 = vsel %vm587, 1, 0
          %v652 = vsel %vm588, 1, 0
          %v653 = vsel %vm589, 1, 0
          %v654 = vsel %vm590, 1, 0
          %v655 = vsel %vm591, 1, 0
          %v656 = vsel %vm592, 1, 0
          %v657 = vsel %vm593, 1, 0
          %v658 = vsel %vm594, 1, 0
          %v659 = vsel %vm595, 1, 0
          %v660 = vsel %vm596, 1, 0
          %v661 = vsel %vm597, 1, 0
          %v662 = vsel %vm598, 1, 0
          %v663 = vsel %vm599, 1, 0
          %v664 = vsel %vm600, 1, 0
          %v665 = vsel %vm601, 1, 0
          %v666 = vsel %vm602, 1, 0
          %v667 = vsel %vm603, 1, 0
          %v668 = vsel %vm604, 1, 0
          %v669 = vsel %vm605, 1, 0
          %v670 = vsel %vm606, 1, 0
          %v671 = vsel %vm607, 1, 0
          %v672 = vsel %vm608, 1, 0
          %v673 = vsel %vm609, 1, 0
          %v674 = vsel %vm610, 1, 0
          %v675 = vsel %vm611, 1, 0
          %v676 = vsel %vm612, 1, 0
          %v677 = vsel %vm613, 1, 0
          %v678 = vsel %vm614, 1, 0
          %v679 = vsel %vm615, 1, 0
          %v680 = vsel %vm616, 1, 0
          %v681 = vsel %vm617, 1, 0
          %v682 = vsel %vm618, 1, 0
          %v683 = vsel %vm619, 1, 0
          %v684 = vsel %vm620, 1, 0
          %v685 = vsel %vm621, 1, 0
          %v686 = vsel %vm622, 1, 0
          %v687 = vsel %vm623, 1, 0
          %v688 = vsel %vm624, 1, 0
          %v689 = vsel %vm625, 1, 0
          %v690 = vsel %vm626, 1, 0
          %v691 = vsel %vm627, 1, 0
          %v692 = vsel %vm628, 1, 0
          %v693 = vsel %vm629, 1, 0
          %v694 = vsel %vm630, 1, 0
          %v695 = vsel %vm631, 1, 0
          %v696 = vsel %vm632, 1, 0
          %v697 = vsel %vm633, 1, 0
          %v698 = vcvt.s32.f32 %v634
          %v699 = vcvt.s32.f32 %v635
          %v700 = vcvt.s32.f32 %v636
          %v701 = vcvt.s32.f32 %v637
          %v702 = vcvt.s32.f32 %v638
          %v703 = vcvt.s32.f32 %v639
          %v704 = vcvt.s32.f32 %v640
          %v705 = vcvt.s32.f32 %v641
          %v706 = vcvt.s32.f32 %v642
          %v707 = vcvt.s32.f32 %v643
          %v708 = vcvt.s32.f32 %v644
          %v709 = vcvt.s32.f32 %v645
          %v710 = vcvt.s32.f32 %v646
          %v711 = vcvt.s32.f32 %v647
          %v712 = vcvt.s32.f32 %v648
          %v713 = vcvt.s32.f32 %v649
          %v714 = vcvt.s32.f32 %v650
          %v715 = vcvt.s32.f32 %v651
          %v716 = vcvt.s32.f32 %v652
          %v717 = vcvt.s32.f32 %v653
          %v718 = vcvt.s32.f32 %v654
          %v719 = vcvt.s32.f32 %v655
          %v720 = vcvt.s32.f32 %v656
          %v721 = vcvt.s32.f32 %v657
          %v722 = vcvt.s32.f32 %v658
          %v723 = vcvt.s32.f32 %v659
          %v724 = vcvt.s32.f32 %v660
          %v725 = vcvt.s32.f32 %v661
          %v726 = vcvt.s32.f32 %v662
          %v727 = vcvt.s32.f32 %v663
          %v728 = vcvt.s32.f32 %v664
          %v729 = vcvt.s32.f32 %v665
          %v730 = vcvt.s32.f32 %v666
          %v731 = vcvt.s32.f32 %v667
          %v732 = vcvt.s32.f32 %v668
          %v733 = vcvt.s32.f32 %v669
          %v734 = vcvt.s32.f32 %v670
          %v735 = vcvt.s32.f32 %v671
          %v736 = vcvt.s32.f32 %v672
          %v737 = vcvt.s32.f32 %v673
          %v738 = vcvt.s32.f32 %v674
          %v739 = vcvt.s32.f32 %v675
          %v740 = vcvt.s32.f32 %v676
          %v741 = vcvt.s32.f32 %v677
          %v742 = vcvt.s32.f32 %v678
          %v743 = vcvt.s32.f32 %v679
          %v744 = vcvt.s32.f32 %v680
          %v745 = vcvt.s32.f32 %v681
          %v746 = vcvt.s32.f32 %v682
          %v747 = vcvt.s32.f32 %v683
          %v748 = vcvt.s32.f32 %v684
          %v749 = vcvt.s32.f32 %v685
          %v750 = vcvt.s32.f32 %v686
          %v751 = vcvt.s32.f32 %v687
          %v752 = vcvt.s32.f32 %v688
          %v753 = vcvt.s32.f32 %v689
          %v754 = vcvt.s32.f32 %v690
          %v755 = vcvt.s32.f32 %v691
          %v756 = vcvt.s32.f32 %v692
          %v757 = vcvt.s32.f32 %v693
          %v758 = vcvt.s32.f32 %v694
          %v759 = vcvt.s32.f32 %v695
          %v760 = vcvt.s32.f32 %v696
          %v761 = vcvt.s32.f32 %v697
          %v762 = vld [vmem:[%s338] sm:$0xff]
          %v763 = vld [vmem:[%s338 + $0x8] sm:$0xff]
          %v764 = vld [vmem:[%s338 + $0x10] sm:$0xff]
          %v765 = vld [vmem:[%s338 + $0x18] sm:$0xff]
          %v766 = vld [vmem:[%s338 + $0x20] sm:$0xff]
          %v767 = vld [vmem:[%s338 + $0x28] sm:$0xff]
          %v768 = vld [vmem:[%s338 + $0x30] sm:$0xff]
          %v769 = vld [vmem:[%s338 + $0x38] sm:$0xff]
          %770 = vmatprep.subr.mxu0 %v699
          %771 = vmatpush1.msra.mxu0 %v698
          %772 = vmatprep.subr.mxu0 %v701
          %773 = vmatpush1.msra.mxu0 %v700
          %774 = vmatprep.subr.mxu0 %v703
          %775 = vmatpush1.msra.mxu0 %v702
          %776 = vmatprep.subr.mxu0 %v705
          %777 = vmatpush1.msra.mxu0 %v704
          %778 = vmatprep.subr.mxu0 %v707
          %779 = vmatpush1.msra.mxu0 %v706
          %780 = vmatprep.subr.mxu0 %v709
          %781 = vmatpush1.msra.mxu0 %v708
          %782 = vmatprep.subr.mxu0 %v711
          %783 = vmatpush1.msra.mxu0 %v710
          %784 = vmatprep.subr.mxu0 %v713
          %785 = vmatpush1.msra.mxu0 %v712
          %786 = vmatprep.subr.mxu0 %v715
          %787 = vmatpush1.msra.mxu0 %v714
          %788 = vmatprep.subr.mxu0 %v717
          %789 = vmatpush1.msra.mxu0 %v716
          %790 = vmatprep.subr.mxu0 %v719
          %791 = vmatpush1.msra.mxu0 %v718
          %792 = vmatprep.subr.mxu0 %v721
          %793 = vmatpush1.msra.mxu0 %v720
          %794 = vmatprep.subr.mxu0 %v723
          %795 = vmatpush1.msra.mxu0 %v722
          %796 = vmatprep.subr.mxu0 %v725
          %797 = vmatpush1.msra.mxu0 %v724
          %798 = vmatprep.subr.mxu0 %v727
          %799 = vmatpush1.msra.mxu0 %v726
          %800 = vmatprep.subr.mxu0 %v729
          %801 = vmatpush1.msra.mxu0 %v728
          %802 = vmatprep.subr.mxu0 %v731
          %803 = vmatpush1.msra.mxu0 %v730
          %804 = vmatprep.subr.mxu0 %v733
          %805 = vmatpush1.msra.mxu0 %v732
          %806 = vmatprep.subr.mxu0 %v735
          %807 = vmatpush1.msra.mxu0 %v734
          %808 = vmatprep.subr.mxu0 %v737
          %809 = vmatpush1.msra.mxu0 %v736
          %810 = vmatprep.subr.mxu0 %v739
          %811 = vmatpush1.msra.mxu0 %v738
          %812 = vmatprep.subr.mxu0 %v741
          %813 = vmatpush1.msra.mxu0 %v740
          %814 = vmatprep.subr.mxu0 %v743
          %815 = vmatpush1.msra.mxu0 %v742
          %816 = vmatprep.subr.mxu0 %v745
          %817 = vmatpush1.msra.mxu0 %v744
          %818 = vmatprep.subr.mxu0 %v747
          %819 = vmatpush1.msra.mxu0 %v746
          %820 = vmatprep.subr.mxu0 %v749
          %821 = vmatpush1.msra.mxu0 %v748
          %822 = vmatprep.subr.mxu0 %v751
          %823 = vmatpush1.msra.mxu0 %v750
          %824 = vmatprep.subr.mxu0 %v753
          %825 = vmatpush1.msra.mxu0 %v752
          %826 = vmatprep.subr.mxu0 %v755
          %827 = vmatpush1.msra.mxu0 %v754
          %828 = vmatprep.subr.mxu0 %v757
          %829 = vmatpush1.msra.mxu0 %v756
          %830 = vmatprep.subr.mxu0 %v759
          %831 = vmatpush1.msra.mxu0 %v758
          %832 = vmatprep.subr.mxu0 %v761
          %833 = vmatpush1.msra.mxu0 %v760
          %834 = vmatprep.mubr.f32.mxu0 %v763
          %835 = vmatmul.mubr.f32.gmra.mrb[0].mxu0 %v762
          %v836 = vpop.f32.mrb[0].mxu0
          %v837 = vadd.f32 0.0, %v836
          %v838 = vpop.f32.mrb[0].mxu0
          %v839 = vadd.f32 0.0, %v838
          %840 = vmatprep.mubr.f32.mxu0 %v765
          %841 = vmatmul.mubr.f32.gmra.mrb[0].mxu0 %v764
          %v842 = vpop.f32.mrb[0].mxu0
          %v843 = vadd.f32 0.0, %v842
          %v844 = vpop.f32.mrb[0].mxu0
          %v845 = vadd.f32 0.0, %v844
          %846 = vmatprep.mubr.f32.mxu0 %v767
          %847 = vmatmul.mubr.f32.gmra.mrb[0].mxu0 %v766
          %v848 = vpop.f32.mrb[0].mxu0
          %v849 = vadd.f32 0.0, %v848
          %v850 = vpop.f32.mrb[0].mxu0
          %v851 = vadd.f32 0.0, %v850
          %852 = vmatprep.mubr.f32.mxu0 %v769
          %853 = vmatmul.mubr.f32.gmra.mrb[0].mxu0 %v768
          %v854 = vpop.f32.mrb[0].mxu0
          %v855 = vadd.f32 0.0, %v854
          %v856 = vpop.f32.mrb[0].mxu0
          %v857 = vadd.f32 0.0, %v856
          %858 = vdwg.mxu0
          %859 = vst [vmem:[%s386] sm:$0xff] %v837
          %860 = vst [vmem:[%s386 + $0x8] sm:$0xff] %v839
          %861 = vst [vmem:[%s386 + $0x10] sm:$0xff] %v843
          %862 = vst [vmem:[%s386 + $0x18] sm:$0xff] %v845
          %863 = vst [vmem:[%s386 + $0x20] sm:$0xff] %v849
          %864 = vst [vmem:[%s386 + $0x28] sm:$0xff] %v851
          %865 = vst [vmem:[%s386 + $0x30] sm:$0xff] %v855
          %866 = vst [vmem:[%s386 + $0x38] sm:$0xff] %v857
        $region90: #{tpu_custom_call.1} parent=73 // pred_fallthru
          _
        %s867 = sld [smem:[#allocation5 + %s417]]
        %p868 = scmp.gt.s32.totalorder %s867, 0
        // Predicated region
        $region91: #{tpu_custom_call.1} parent=73 // pred_check
          %p869 = pneg %p868
        $region92: #{tpu_custom_call.1} parent=73 // pred_check_branch
          %871 = sbr.rel (%p869) target = $region94
        $region93: #{tpu_custom_call.1} parent=73 // pred_region
          %v872 = vld [vmem:[%s404] sm:$0xff]
          %v873 = vld [vmem:[%s404 + $0x8] sm:$0xff]
          %v874 = vld [vmem:[%s404 + $0x10] sm:$0xff]
          %v875 = vld [vmem:[%s404 + $0x18] sm:$0xff]
          %v876 = vld [vmem:[%s404 + $0x20] sm:$0xff]
          %v877 = vld [vmem:[%s404 + $0x28] sm:$0xff]
          %v878 = vld [vmem:[%s404 + $0x30] sm:$0xff]
          %v879 = vld [vmem:[%s404 + $0x38] sm:$0xff]
          %v880 = vld [vmem:[%s404 + $0x40] sm:$0xff]
          %v881 = vld [vmem:[%s404 + $0x48] sm:$0xff]
          %v882 = vld [vmem:[%s404 + $0x50] sm:$0xff]
          %v883 = vld [vmem:[%s404 + $0x58] sm:$0xff]
          %v884 = vld [vmem:[%s404 + $0x60] sm:$0xff]
          %v885 = vld [vmem:[%s404 + $0x68] sm:$0xff]
          %v886 = vld [vmem:[%s404 + $0x70] sm:$0xff]
          %v887 = vld [vmem:[%s404 + $0x78] sm:$0xff]
          %v888 = vld [vmem:[%s404 + $0x80] sm:$0xff]
          %v889 = vld [vmem:[%s404 + $0x88] sm:$0xff]
          %v890 = vld [vmem:[%s404 + $0x90] sm:$0xff]
          %v891 = vld [vmem:[%s404 + $0x98] sm:$0xff]
          %v892 = vld [vmem:[%s404 + $0xa0] sm:$0xff]
          %v893 = vld [vmem:[%s404 + $0xa8] sm:$0xff]
          %v894 = vld [vmem:[%s404 + $0xb0] sm:$0xff]
          %v895 = vld [vmem:[%s404 + $0xb8] sm:$0xff]
          %v896 = vld [vmem:[%s404 + $0xc0] sm:$0xff]
          %v897 = vld [vmem:[%s404 + $0xc8] sm:$0xff]
          %v898 = vld [vmem:[%s404 + $0xd0] sm:$0xff]
          %v899 = vld [vmem:[%s404 + $0xd8] sm:$0xff]
          %v900 = vld [vmem:[%s404 + $0xe0] sm:$0xff]
          %v901 = vld [vmem:[%s404 + $0xe8] sm:$0xff]
          %v902 = vld [vmem:[%s404 + $0xf0] sm:$0xff]
          %v903 = vld [vmem:[%s404 + $0xf8] sm:$0xff]
          %904 = vset.pattern.permute.xlu0 0
          %905 = vperm.xlu0 %904, %v872
          %v906 = vpop.permute.xlu0 %905
          %907 = vset.pattern.permute.xlu0 0
          %908 = vperm.xlu0 %907, %v873
          %v909 = vpop.permute.xlu0 %908
          %910 = vset.pattern.permute.xlu0 0
          %911 = vperm.xlu0 %910, %v874
          %v912 = vpop.permute.xlu0 %911
          %913 = vset.pattern.permute.xlu0 0
          %914 = vperm.xlu0 %913, %v875
          %v915 = vpop.permute.xlu0 %914
          %916 = vset.pattern.permute.xlu0 0
          %917 = vperm.xlu0 %916, %v876
          %v918 = vpop.permute.xlu0 %917
          %919 = vset.pattern.permute.xlu0 0
          %920 = vperm.xlu0 %919, %v877
          %v921 = vpop.permute.xlu0 %920
          %922 = vset.pattern.permute.xlu0 0
          %923 = vperm.xlu0 %922, %v878
          %v924 = vpop.permute.xlu0 %923
          %925 = vset.pattern.permute.xlu0 0
          %926 = vperm.xlu0 %925, %v879
          %v927 = vpop.permute.xlu0 %926
          %928 = vset.pattern.permute.xlu0 0
          %929 = vperm.xlu0 %928, %v880
          %v930 = vpop.permute.xlu0 %929
          %931 = vset.pattern.permute.xlu0 0
          %932 = vperm.xlu0 %931, %v881
          %v933 = vpop.permute.xlu0 %932
          %934 = vset.pattern.permute.xlu0 0
          %935 = vperm.xlu0 %934, %v882
          %v936 = vpop.permute.xlu0 %935
          %937 = vset.pattern.permute.xlu0 0
          %938 = vperm.xlu0 %937, %v883
          %v939 = vpop.permute.xlu0 %938
          %940 = vset.pattern.permute.xlu0 0
          %941 = vperm.xlu0 %940, %v884
          %v942 = vpop.permute.xlu0 %941
          %943 = vset.pattern.permute.xlu0 0
          %944 = vperm.xlu0 %943, %v885
          %v945 = vpop.permute.xlu0 %944
          %946 = vset.pattern.permute.xlu0 0
          %947 = vperm.xlu0 %946, %v886
          %v948 = vpop.permute.xlu0 %947
          %949 = vset.pattern.permute.xlu0 0
          %950 = vperm.xlu0 %949, %v887
          %v951 = vpop.permute.xlu0 %950
          %952 = vset.pattern.permute.xlu0 0
          %953 = vperm.xlu0 %952, %v888
          %v954 = vpop.permute.xlu0 %953
          %955 = vset.pattern.permute.xlu0 0
          %956 = vperm.xlu0 %955, %v889
          %v957 = vpop.permute.xlu0 %956
          %958 = vset.pattern.permute.xlu0 0
          %959 = vperm.xlu0 %958, %v890
          %v960 = vpop.permute.xlu0 %959
          %961 = vset.pattern.permute.xlu0 0
          %962 = vperm.xlu0 %961, %v891
          %v963 = vpop.permute.xlu0 %962
          %964 = vset.pattern.permute.xlu0 0
          %965 = vperm.xlu0 %964, %v892
          %v966 = vpop.permute.xlu0 %965
          %967 = vset.pattern.permute.xlu0 0
          %968 = vperm.xlu0 %967, %v893
          %v969 = vpop.permute.xlu0 %968
          %970 = vset.pattern.permute.xlu0 0
          %971 = vperm.xlu0 %970, %v894
          %v972 = vpop.permute.xlu0 %971
          %973 = vset.pattern.permute.xlu0 0
          %974 = vperm.xlu0 %973, %v895
          %v975 = vpop.permute.xlu0 %974
          %976 = vset.pattern.permute.xlu0 0
          %977 = vperm.xlu0 %976, %v896
          %v978 = vpop.permute.xlu0 %977
          %979 = vset.pattern.permute.xlu0 0
          %980 = vperm.xlu0 %979, %v897
          %v981 = vpop.permute.xlu0 %980
          %982 = vset.pattern.permute.xlu0 0
          %983 = vperm.xlu0 %982, %v898
          %v984 = vpop.permute.xlu0 %983
          %985 = vset.pattern.permute.xlu0 0
          %986 = vperm.xlu0 %985, %v899
          %v987 = vpop.permute.xlu0 %986
          %988 = vset.pattern.permute.xlu0 0
          %989 = vperm.xlu0 %988, %v900
          %v990 = vpop.permute.xlu0 %989
          %991 = vset.pattern.permute.xlu0 0
          %992 = vperm.xlu0 %991, %v901
          %v993 = vpop.permute.xlu0 %992
          %994 = vset.pattern.permute.xlu0 0
          %995 = vperm.xlu0 %994, %v902
          %v996 = vpop.permute.xlu0 %995
          %997 = vset.pattern.permute.xlu0 0
          %998 = vperm.xlu0 %997, %v903
          %v999 = vpop.permute.xlu0 %998
          %vm1000 = vcmp.eq.s32.totalorder %v906, %v424
          %vm1001 = vcmp.eq.s32.totalorder %v906, %v425
          %vm1002 = vcmp.eq.s32.totalorder %v909, %v424
          %vm1003 = vcmp.eq.s32.totalorder %v909, %v425
          %vm1004 = vcmp.eq.s32.totalorder %v912, %v424
          %vm1005 = vcmp.eq.s32.totalorder %v912, %v425
          %vm1006 = vcmp.eq.s32.totalorder %v915, %v424
          %vm1007 = vcmp.eq.s32.totalorder %v915, %v425
          %vm1008 = vcmp.eq.s32.totalorder %v918, %v424
          %vm1009 = vcmp.eq.s32.totalorder %v918, %v425
          %vm1010 = vcmp.eq.s32.totalorder %v921, %v424
          %vm1011 = vcmp.eq.s32.totalorder %v921, %v425
          %vm1012 = vcmp.eq.s32.totalorder %v924, %v424
          %vm1013 = vcmp.eq.s32.totalorder %v924, %v425
          %vm1014 = vcmp.eq.s32.totalorder %v927, %v424
          %vm1015 = vcmp.eq.s32.totalorder %v927, %v425
          %vm1016 = vcmp.eq.s32.totalorder %v930, %v424
          %vm1017 = vcmp.eq.s32.totalorder %v930, %v425
          %vm1018 = vcmp.eq.s32.totalorder %v933, %v424
          %vm1019 = vcmp.eq.s32.totalorder %v933, %v425
          %vm1020 = vcmp.eq.s32.totalorder %v936, %v424
          %vm1021 = vcmp.eq.s32.totalorder %v936, %v425
          %vm1022 = vcmp.eq.s32.totalorder %v939, %v424
          %vm1023 = vcmp.eq.s32.totalorder %v939, %v425
          %vm1024 = vcmp.eq.s32.totalorder %v942, %v424
          %vm1025 = vcmp.eq.s32.totalorder %v942, %v425
          %vm1026 = vcmp.eq.s32.totalorder %v945, %v424
          %vm1027 = vcmp.eq.s32.totalorder %v945, %v425
          %vm1028 = vcmp.eq.s32.totalorder %v948, %v424
          %vm1029 = vcmp.eq.s32.totalorder %v948, %v425
          %vm1030 = vcmp.eq.s32.totalorder %v951, %v424
          %vm1031 = vcmp.eq.s32.totalorder %v951, %v425
          %vm1032 = vcmp.eq.s32.totalorder %v954, %v424
          %vm1033 = vcmp.eq.s32.totalorder %v954, %v425
          %vm1034 = vcmp.eq.s32.totalorder %v957, %v424
          %vm1035 = vcmp.eq.s32.totalorder %v957, %v425
          %vm1036 = vcmp.eq.s32.totalorder %v960, %v424
          %vm1037 = vcmp.eq.s32.totalorder %v960, %v425
          %vm1038 = vcmp.eq.s32.totalorder %v963, %v424
          %vm1039 = vcmp.eq.s32.totalorder %v963, %v425
          %vm1040 = vcmp.eq.s32.totalorder %v966, %v424
          %vm1041 = vcmp.eq.s32.totalorder %v966, %v425
          %vm1042 = vcmp.eq.s32.totalorder %v969, %v424
          %vm1043 = vcmp.eq.s32.totalorder %v969, %v425
          %vm1044 = vcmp.eq.s32.totalorder %v972, %v424
          %vm1045 = vcmp.eq.s32.totalorder %v972, %v425
          %vm1046 = vcmp.eq.s32.totalorder %v975, %v424
          %vm1047 = vcmp.eq.s32.totalorder %v975, %v425
          %vm1048 = vcmp.eq.s32.totalorder %v978, %v424
          %vm1049 = vcmp.eq.s32.totalorder %v978, %v425
          %vm1050 = vcmp.eq.s32.totalorder %v981, %v424
          %vm1051 = vcmp.eq.s32.totalorder %v981, %v425
          %vm1052 = vcmp.eq.s32.totalorder %v984, %v424
          %vm1053 = vcmp.eq.s32.totalorder %v984, %v425
          %vm1054 = vcmp.eq.s32.totalorder %v987, %v424
          %vm1055 = vcmp.eq.s32.totalorder %v987, %v425
          %vm1056 = vcmp.eq.s32.totalorder %v990, %v424
          %vm1057 = vcmp.eq.s32.totalorder %v990, %v425
          %vm1058 = vcmp.eq.s32.totalorder %v993, %v424
          %vm1059 = vcmp.eq.s32.totalorder %v993, %v425
          %vm1060 = vcmp.eq.s32.totalorder %v996, %v424
          %vm1061 = vcmp.eq.s32.totalorder %v996, %v425
          %vm1062 = vcmp.eq.s32.totalorder %v999, %v424
          %vm1063 = vcmp.eq.s32.totalorder %v999, %v425
          %v1064 = vsel %vm1000, 1, 0
          %v1065 = vsel %vm1001, 1, 0
          %v1066 = vsel %vm1002, 1, 0
          %v1067 = vsel %vm1003, 1, 0
          %v1068 = vsel %vm1004, 1, 0
          %v1069 = vsel %vm1005, 1, 0
          %v1070 = vsel %vm1006, 1, 0
          %v1071 = vsel %vm1007, 1, 0
          %v1072 = vsel %vm1008, 1, 0
          %v1073 = vsel %vm1009, 1, 0
          %v1074 = vsel %vm1010, 1, 0
          %v1075 = vsel %vm1011, 1, 0
          %v1076 = vsel %vm1012, 1, 0
          %v1077 = vsel %vm1013, 1, 0
          %v1078 = vsel %vm1014, 1, 0
          %v1079 = vsel %vm1015, 1, 0
          %v1080 = vsel %vm1016, 1, 0
          %v1081 = vsel %vm1017, 1, 0
          %v1082 = vsel %vm1018, 1, 0
          %v1083 = vsel %vm1019, 1, 0
          %v1084 = vsel %vm1020, 1, 0
          %v1085 = vsel %vm1021, 1, 0
          %v1086 = vsel %vm1022, 1, 0
          %v1087 = vsel %vm1023, 1, 0
          %v1088 = vsel %vm1024, 1, 0
          %v1089 = vsel %vm1025, 1, 0
          %v1090 = vsel %vm1026, 1, 0
          %v1091 = vsel %vm1027, 1, 0
          %v1092 = vsel %vm1028, 1, 0
          %v1093 = vsel %vm1029, 1, 0
          %v1094 = vsel %vm1030, 1, 0
          %v1095 = vsel %vm1031, 1, 0
          %v1096 = vsel %vm1032, 1, 0
          %v1097 = vsel %vm1033, 1, 0
          %v1098 = vsel %vm1034, 1, 0
          %v1099 = vsel %vm1035, 1, 0
          %v1100 = vsel %vm1036, 1, 0
          %v1101 = vsel %vm1037, 1, 0
          %v1102 = vsel %vm1038, 1, 0
          %v1103 = vsel %vm1039, 1, 0
          %v1104 = vsel %vm1040, 1, 0
          %v1105 = vsel %vm1041, 1, 0
          %v1106 = vsel %vm1042, 1, 0
          %v1107 = vsel %vm1043, 1, 0
          %v1108 = vsel %vm1044, 1, 0
          %v1109 = vsel %vm1045, 1, 0
          %v1110 = vsel %vm1046, 1, 0
          %v1111 = vsel %vm1047, 1, 0
          %v1112 = vsel %vm1048, 1, 0
          %v1113 = vsel %vm1049, 1, 0
          %v1114 = vsel %vm1050, 1, 0
          %v1115 = vsel %vm1051, 1, 0
          %v1116 = vsel %vm1052, 1, 0
          %v1117 = vsel %vm1053, 1, 0
          %v1118 = vsel %vm1054, 1, 0
          %v1119 = vsel %vm1055, 1, 0
          %v1120 = vsel %vm1056, 1, 0
          %v1121 = vsel %vm1057, 1, 0
          %v1122 = vsel %vm1058, 1, 0
          %v1123 = vsel %vm1059, 1, 0
          %v1124 = vsel %vm1060, 1, 0
          %v1125 = vsel %vm1061, 1, 0
          %v1126 = vsel %vm1062, 1, 0
          %v1127 = vsel %vm1063, 1, 0
          %v1128 = vcvt.s32.f32 %v1064
          %v1129 = vcvt.s32.f32 %v1065
          %v1130 = vcvt.s32.f32 %v1066
          %v1131 = vcvt.s32.f32 %v1067
          %v1132 = vcvt.s32.f32 %v1068
          %v1133 = vcvt.s32.f32 %v1069
          %v1134 = vcvt.s32.f32 %v1070
          %v1135 = vcvt.s32.f32 %v1071
          %v1136 = vcvt.s32.f32 %v1072
          %v1137 = vcvt.s32.f32 %v1073
          %v1138 = vcvt.s32.f32 %v1074
          %v1139 = vcvt.s32.f32 %v1075
          %v1140 = vcvt.s32.f32 %v1076
          %v1141 = vcvt.s32.f32 %v1077
          %v1142 = vcvt.s32.f32 %v1078
          %v1143 = vcvt.s32.f32 %v1079
          %v1144 = vcvt.s32.f32 %v1080
          %v1145 = vcvt.s32.f32 %v1081
          %v1146 = vcvt.s32.f32 %v1082
          %v1147 = vcvt.s32.f32 %v1083
          %v1148 = vcvt.s32.f32 %v1084
          %v1149 = vcvt.s32.f32 %v1085
          %v1150 = vcvt.s32.f32 %v1086
          %v1151 = vcvt.s32.f32 %v1087
          %v1152 = vcvt.s32.f32 %v1088
          %v1153 = vcvt.s32.f32 %v1089
          %v1154 = vcvt.s32.f32 %v1090
          %v1155 = vcvt.s32.f32 %v1091
          %v1156 = vcvt.s32.f32 %v1092
          %v1157 = vcvt.s32.f32 %v1093
          %v1158 = vcvt.s32.f32 %v1094
          %v1159 = vcvt.s32.f32 %v1095
          %v1160 = vcvt.s32.f32 %v1096
          %v1161 = vcvt.s32.f32 %v1097
          %v1162 = vcvt.s32.f32 %v1098
          %v1163 = vcvt.s32.f32 %v1099
          %v1164 = vcvt.s32.f32 %v1100
          %v1165 = vcvt.s32.f32 %v1101
          %v1166 = vcvt.s32.f32 %v1102
          %v1167 = vcvt.s32.f32 %v1103
          %v1168 = vcvt.s32.f32 %v1104
          %v1169 = vcvt.s32.f32 %v1105
          %v1170 = vcvt.s32.f32 %v1106
          %v1171 = vcvt.s32.f32 %v1107
          %v1172 = vcvt.s32.f32 %v1108
          %v1173 = vcvt.s32.f32 %v1109
          %v1174 = vcvt.s32.f32 %v1110
          %v1175 = vcvt.s32.f32 %v1111
          %v1176 = vcvt.s32.f32 %v1112
          %v1177 = vcvt.s32.f32 %v1113
          %v1178 = vcvt.s32.f32 %v1114
          %v1179 = vcvt.s32.f32 %v1115
          %v1180 = vcvt.s32.f32 %v1116
          %v1181 = vcvt.s32.f32 %v1117
          %v1182 = vcvt.s32.f32 %v1118
          %v1183 = vcvt.s32.f32 %v1119
          %v1184 = vcvt.s32.f32 %v1120
          %v1185 = vcvt.s32.f32 %v1121
          %v1186 = vcvt.s32.f32 %v1122
          %v1187 = vcvt.s32.f32 %v1123
          %v1188 = vcvt.s32.f32 %v1124
          %v1189 = vcvt.s32.f32 %v1125
          %v1190 = vcvt.s32.f32 %v1126
          %v1191 = vcvt.s32.f32 %v1127
          %v1192 = vld [vmem:[%s345] sm:$0xff]
          %v1193 = vld [vmem:[%s345 + $0x8] sm:$0xff]
          %v1194 = vld [vmem:[%s345 + $0x10] sm:$0xff]
          %v1195 = vld [vmem:[%s345 + $0x18] sm:$0xff]
          %v1196 = vld [vmem:[%s345 + $0x20] sm:$0xff]
          %v1197 = vld [vmem:[%s345 + $0x28] sm:$0xff]
          %v1198 = vld [vmem:[%s345 + $0x30] sm:$0xff]
          %v1199 = vld [vmem:[%s345 + $0x38] sm:$0xff]
          %1200 = vmatprep.subr.mxu0 %v1129
          %1201 = vmatpush1.msra.mxu0 %v1128
          %1202 = vmatprep.subr.mxu0 %v1131
          %1203 = vmatpush1.msra.mxu0 %v1130
          %1204 = vmatprep.subr.mxu0 %v1133
          %1205 = vmatpush1.msra.mxu0 %v1132
          %1206 = vmatprep.subr.mxu0 %v1135
          %1207 = vmatpush1.msra.mxu0 %v1134
          %1208 = vmatprep.subr.mxu0 %v1137
          %1209 = vmatpush1.msra.mxu0 %v1136
          %1210 = vmatprep.subr.mxu0 %v1139
          %1211 = vmatpush1.msra.mxu0 %v1138
          %1212 = vmatprep.subr.mxu0 %v1141
          %1213 = vmatpush1.msra.mxu0 %v1140
          %1214 = vmatprep.subr.mxu0 %v1143
          %1215 = vmatpush1.msra.mxu0 %v1142
          %1216 = vmatprep.subr.mxu0 %v1145
          %1217 = vmatpush1.msra.mxu0 %v1144
          %1218 = vmatprep.subr.mxu0 %v1147
          %1219 = vmatpush1.msra.mxu0 %v1146
          %1220 = vmatprep.subr.mxu0 %v1149
          %1221 = vmatpush1.msra.mxu0 %v1148
          %1222 = vmatprep.subr.mxu0 %v1151
          %1223 = vmatpush1.msra.mxu0 %v1150
          %1224 = vmatprep.subr.mxu0 %v1153
          %1225 = vmatpush1.msra.mxu0 %v1152
          %1226 = vmatprep.subr.mxu0 %v1155
          %1227 = vmatpush1.msra.mxu0 %v1154
          %1228 = vmatprep.subr.mxu0 %v1157
          %1229 = vmatpush1.msra.mxu0 %v1156
          %1230 = vmatprep.subr.mxu0 %v1159
          %1231 = vmatpush1.msra.mxu0 %v1158
          %1232 = vmatprep.subr.mxu0 %v1161
          %1233 = vmatpush1.msra.mxu0 %v1160
          %1234 = vmatprep.subr.mxu0 %v1163
          %1235 = vmatpush1.msra.mxu0 %v1162
          %1236 = vmatprep.subr.mxu0 %v1165
          %1237 = vmatpush1.msra.mxu0 %v1164
          %1238 = vmatprep.subr.mxu0 %v1167
          %1239 = vmatpush1.msra.mxu0 %v1166
          %1240 = vmatprep.subr.mxu0 %v1169
          %1241 = vmatpush1.msra.mxu0 %v1168
          %1242 = vmatprep.subr.mxu0 %v1171
          %1243 = vmatpush1.msra.mxu0 %v1170
          %1244 = vmatprep.subr.mxu0 %v1173
          %1245 = vmatpush1.msra.mxu0 %v1172
          %1246 = vmatprep.subr.mxu0 %v1175
          %1247 = vmatpush1.msra.mxu0 %v1174
          %1248 = vmatprep.subr.mxu0 %v1177
          %1249 = vmatpush1.msra.mxu0 %v1176
          %1250 = vmatprep.subr.mxu0 %v1179
          %1251 = vmatpush1.msra.mxu0 %v1178
          %1252 = vmatprep.subr.mxu0 %v1181
          %1253 = vmatpush1.msra.mxu0 %v1180
          %1254 = vmatprep.subr.mxu0 %v1183
          %1255 = vmatpush1.msra.mxu0 %v1182
          %1256 = vmatprep.subr.mxu0 %v1185
          %1257 = vmatpush1.msra.mxu0 %v1184
          %1258 = vmatprep.subr.mxu0 %v1187
          %1259 = vmatpush1.msra.mxu0 %v1186
          %1260 = vmatprep.subr.mxu0 %v1189
          %1261 = vmatpush1.msra.mxu0 %v1188
          %1262 = vmatprep.subr.mxu0 %v1191
          %1263 = vmatpush1.msra.mxu0 %v1190
          %1264 = vmatprep.mubr.f32.mxu0 %v1193
          %1265 = vmatmul.mubr.f32.gmra.mrb[0].mxu0 %v1192
          %v1266 = vpop.f32.mrb[0].mxu0
          %v1267 = vadd.f32 0.0, %v1266
          %v1268 = vpop.f32.mrb[0].mxu0
          %v1269 = vadd.f32 0.0, %v1268
          %1270 = vmatprep.mubr.f32.mxu0 %v1195
          %1271 = vmatmul.mubr.f32.gmra.mrb[0].mxu0 %v1194
          %v1272 = vpop.f32.mrb[0].mxu0
          %v1273 = vadd.f32 0.0, %v1272
          %v1274 = vpop.f32.mrb[0].mxu0
          %v1275 = vadd.f32 0.0, %v1274
          %1276 = vmatprep.mubr.f32.mxu0 %v1197
          %1277 = vmatmul.mubr.f32.gmra.mrb[0].mxu0 %v1196
          %v1278 = vpop.f32.mrb[0].mxu0
          %v1279 = vadd.f32 0.0, %v1278
          %v1280 = vpop.f32.mrb[0].mxu0
          %v1281 = vadd.f32 0.0, %v1280
          %1282 = vmatprep.mubr.f32.mxu0 %v1199
          %1283 = vmatmul.mubr.f32.gmra.mrb[0].mxu0 %v1198
          %v1284 = vpop.f32.mrb[0].mxu0
          %v1285 = vadd.f32 0.0, %v1284
          %v1286 = vpop.f32.mrb[0].mxu0
          %v1287 = vadd.f32 0.0, %v1286
          %1288 = vdwg.mxu0
          %v1289 = vld [vmem:[%s386] sm:$0xff]
          %v1290 = vld [vmem:[%s386 + $0x8] sm:$0xff]
          %v1291 = vld [vmem:[%s386 + $0x10] sm:$0xff]
          %v1292 = vld [vmem:[%s386 + $0x18] sm:$0xff]
          %v1293 = vld [vmem:[%s386 + $0x20] sm:$0xff]
          %v1294 = vld [vmem:[%s386 + $0x28] sm:$0xff]
          %v1295 = vld [vmem:[%s386 + $0x30] sm:$0xff]
          %v1296 = vld [vmem:[%s386 + $0x38] sm:$0xff]
          %v1297 = vadd.f32 %v1289, %v1267
          %v1298 = vadd.f32 %v1290, %v1269
          %v1299 = vadd.f32 %v1291, %v1273
          %v1300 = vadd.f32 %v1292, %v1275
          %v1301 = vadd.f32 %v1293, %v1279
          %v1302 = vadd.f32 %v1294, %v1281
          %v1303 = vadd.f32 %v1295, %v1285
          %v1304 = vadd.f32 %v1296, %v1287
          %1305 = vst [vmem:[%s386] sm:$0xff] %v1297
          %1306 = vst [vmem:[%s386 + $0x8] sm:$0xff] %v1298
          %1307 = vst [vmem:[%s386 + $0x10] sm:$0xff] %v1299
          %1308 = vst [vmem:[%s386 + $0x18] sm:$0xff] %v1300
          %1309 = vst [vmem:[%s386 + $0x20] sm:$0xff] %v1301
          %1310 = vst [vmem:[%s386 + $0x28] sm:$0xff] %v1302
          %1311 = vst [vmem:[%s386 + $0x30] sm:$0xff] %v1303
          %1312 = vst [vmem:[%s386 + $0x38] sm:$0xff] %v1304
        $region94: #{tpu_custom_call.1} parent=73 // pred_fallthru
          _
        %s1313 = sand.u32 %s181, 1
        %s1314 = scalar_lea.sflag [#allocation9], %s1313
        %s1315 = sand.u32 %s181, 1
        %s1316 = smul.addr %s1315, 64
        %s1317 = scalar_lea.vmem [#allocation8], %s1316
        // Predicated region
        $region95: #{tpu_custom_call.1} parent=73 // pred_check
          %p1318 = pneg %p191
        $region96: #{tpu_custom_call.1} parent=73 // pred_check_branch
          %1320 = sbr.rel (%p1318) target = $region98
        $region97: #{tpu_custom_call.1} parent=73 // pred_region
          %s1321 = smul.u32 2, %s40
          %s1323 = ssub.s32 1024, 1024
          %1324 = vsyncadd %s1314, %s1323
          %s1325 = smul.addr %s39, 8
          %s1326 = sadd.s32 %s1321, %s1325
          %s1327 = smul.addr %s1326, 128
          %s1328 = scalar_lea.hbm %s7, %s1327
          %s1329 = sshll.u32 %s1317, 4
          %s1330 = int_to_ptr.vmem [resolvable:$true] %s1329
          %1335 = dma.vmem_to_hbm [thread:$0]  %s1330, 1024, %s1328, %s1314, 256, 256, 16
        $region98: #{tpu_custom_call.1} parent=73 // pred_fallthru
          _
      $region74: #{tpu_custom_call.1} parent=5 // pred_fallthru
        _
      %p1336 = scmp.le.s32.totalorder 2, %s30
      // Predicated region
      $region99: #{tpu_custom_call.1} parent=5 // pred_check
        %p1337 = pneg %p1336
      $region100: #{tpu_custom_call.1} parent=5 // pred_check_branch
        %1339 = sbr.rel (%p1337) target = $region102
      $region101: #{tpu_custom_call.1} parent=5 // pred_region
        %s1340 = ssub.s32 %s30, 2
        // Predicated region
        $region103: #{tpu_custom_call.1} parent=101 // pred_check
          %p1341 = pneg %p197
        $region104: #{tpu_custom_call.1} parent=101 // pred_check_branch
          %1343 = sbr.rel (%p1341) target = $region106
        $region105: #{tpu_custom_call.1} parent=101 // pred_region
          %s1344 = sand.u32 %s182, 1
          %s1345 = scalar_lea.sflag [#allocation9], %s1344
          %s1346 = sand.u32 %s182, 1
          %s1347 = smul.addr %s1346, 64
          %s1348 = scalar_lea.vmem [#allocation8], %s1347
          %1349 = dma.done %s1345, 1024
        $region106: #{tpu_custom_call.1} parent=101 // pred_fallthru
          _
      $region102: #{tpu_custom_call.1} parent=5 // pred_fallthru
        _
    $region6: #{tpu_custom_call.1} parent=1 // loop_footer
      %s34 = sadd.s32 1, %s30
    $region7: #{tpu_custom_call.1} parent=1 // loop_footer_branch
      %29 = sbr.rel target = $region3
    $region8: #{tpu_custom_call.1} parent=1 // loop_exit
      _
    %1350 = vsyncpa [#allocation9], 1
    %s1351 = scalar_lea.sflag [#allocation9], 1
    %1352 = vsyncpa %s1351, 1

</llo_original>
